<compile_context>
chip_gen: v5e
topology: v5e:2x2
jax: 0.10.0
libtpu: 0.0.40
codegen_flags: <defaults>
</compile_context>

<pallas_src>
import functools
import math

import jax
import jax.numpy as jnp
from jax.experimental import pallas as pl
from jax.experimental.pallas import tpu as pltpu


def temporal_block_kernel(x_ref, w_ref, o_ref, *, pool, k_sz, pad_l, nb, c_in):
    # x_ref: (pool*C_in, n_cols)  x_ref[p*C_in + c, lo*nb + b] = x[b, c, lo*pool + p]
    # w_ref: (K, C_out, C_in)     w_ref[k, o, c] = w[o, c, k]
    # o_ref: (C_out, n_cols)      lane-dense output block (doubles as the phase-max acc)
    n_cols = o_ref.shape[-1]
    lane = jax.lax.broadcasted_iota(jnp.int32, (1, n_cols), 1)
    keep_left = lane >= nb               # zero the lo==0 column group  ('same' left pad)
    keep_right = lane < (n_cols - nb)    # zero the lo==L_out-1 group   ('same' right pad)

    for p in range(pool):                # unrolled: output phases
        acc = None
        for k in range(k_sz):            # unrolled: conv taps, direct accumulation
            q = p + k - pad_l            # input phase required by this tap
            if 0 <= q < pool:
                tap = x_ref[q * c_in:(q + 1) * c_in, :]
            elif q < 0:
                # previous l_out group: shift right by nb lanes (XLU roll) and
                # zero-fill the first output column.
                src = x_ref[(q + pool) * c_in:(q + pool + 1) * c_in, :]
                tap = jnp.where(keep_left, pltpu.roll(src, shift=nb, axis=1), 0.0)
            else:
                # next l_out group: shift left by nb lanes and zero-fill the last column.
                src = x_ref[(q - pool) * c_in:(q - pool + 1) * c_in, :]
                tap = jnp.where(keep_right,
                                pltpu.roll(src, shift=n_cols - nb, axis=1), 0.0)
            d = jnp.dot(w_ref[k], tap, preferred_element_type=jnp.float32)
            acc = d if acc is None else acc + d
        y = jnp.maximum(acc, 0.0)        # ReLU before pooling
        # Running max over phases kept in VMEM (o_ref) to cap vreg pressure.
        if p == 0:
            o_ref[...] = y.astype(o_ref.dtype)
        else:
            o_ref[...] = jnp.maximum(o_ref[...], y.astype(o_ref.dtype))
    # MaxPool of ReLU outputs is already non-negative -> final ReLU dropped.
    # TODO(synk): `self.dropout` is referenced in the PyTorch Sequential but never
    # defined in __init__; treated as identity (inference-mode dropout).


def temporal_block(x, w, *, pool=10, target_lanes=1024):
    N, C_in, L = x.shape
    C_out, C_in_w, K = w.shape
    assert C_in_w == C_in

    # PyTorch MaxPool1d silently drops the remainder -> truncate.
    # TODO(synk): when L % pool != 0 PyTorch's conv still sees the dropped tail as
    # real input for the last pad_r positions; we zero-pad there instead.
    L_out = L // pool
    assert L_out > 0
    if L_out * pool != L:
        x = x[:, :, :L_out * pool]
    L = L_out * pool

    pad_l = (K - 1) // 2
    pad_r = K - 1 - pad_l
    assert pad_l < pool and pad_r < pool, "taps must not span more than one pool group"

    # --- tile-size selection --------------------------------------------------
    # nb batch elements per grid step; n_cols = nb*L_out must be a multiple of 128
    # (lane-dense, unmasked stores), target <= ~target_lanes lanes per step, keep
    # G >= 2 grid steps so both v7x TensorCores get pipelined work.
    def round_up(a, b):
        return -(-a // b) * b

    m = 128 // math.gcd(L_out, 128)              # nb must be a multiple of m
    nb = max(1, min(max(1, target_lanes // L_out), max(1, N // 2)))
    nb = round_up(nb, m)
    n_pad = round_up(N, nb)
    G = n_pad // nb
    n_cols = nb * L_out                          # multiple of 128 by construction

    if n_pad != N:
        x = jnp.pad(x, ((0, n_pad - N), (0, 0), (0, 0)))

    # --- phase-major, sublane-dense relayout (layout plumbing) -----------------
    #   x_ph[p*C_in + c, (g*L_out + lo)*nb + b] = x[g*nb + b, c, lo*pool + p]
    # TODO(synk): when TemporalBlocks are chained (TCN-style), keep activations in
    # this layout between layers so this HBM relayout pass is paid once, not per layer.
    x_ph = (x.reshape(G, nb, C_in, L_out, pool)
              .transpose(4, 2, 0, 3, 1)
              .reshape(pool * C_in, G * n_cols))
    # weight layout: w_k[k, o, c] = w[o, c, k]  -> one tiny dot per tap in the kernel
    w_k = jnp.transpose(w, (2, 0, 1))

    kernel = functools.partial(temporal_block_kernel,
                               pool=pool, k_sz=K, pad_l=pad_l, nb=nb, c_in=C_in)

    itemsize = x.dtype.itemsize
    # double-buffered x + out blocks + resident weights per grid step
    vmem_need = (2 * (pool * C_in + C_out) * n_cols + 2 * K * C_out * C_in) * itemsize
    vmem_limit = int(min(64 * 1024 * 1024, max(4 * vmem_need, 8 * 1024 * 1024)))

    cost = pl.CostEstimate(
        flops=2 * n_pad * C_out * C_in * K * L,
        transcendentals=0,
        bytes_accessed=int((x_ph.size + w_k.size + C_out * G * n_cols) * itemsize),
    )

    out2 = pl.pallas_call(
        kernel,
        out_shape=jax.ShapeDtypeStruct((C_out, G * n_cols), x.dtype),
        grid_spec=pltpu.PrefetchScalarGridSpec(
            num_scalar_prefetch=0,
            grid=(G,),                           # one program per batch group
            in_specs=[
                pl.BlockSpec((pool * C_in, n_cols), lambda g: (0, g)),
                pl.BlockSpec((K, C_out, C_in), lambda g: (0, 0, 0)),
            ],
            out_specs=pl.BlockSpec((C_out, n_cols), lambda g: (0, g)),
        ),
        compiler_params=pltpu.CompilerParams(
            dimension_semantics=("parallel",),
            vmem_limit_bytes=vmem_limit,
        ),
        cost_estimate=cost,
    )(x_ph, w_k)

    # Un-flatten the lane-dense output back to (N, C_out, L_out).
    out = (out2.reshape(C_out, G, L_out, nb)
               .transpose(1, 3, 0, 2)
               .reshape(n_pad, C_out, L_out))
    return out[:N]


def weight_norm_effective(v, g):
    # PyTorch weight_norm(dim=0): W[o] = g[o] * V[o] / ||V[o]||_2
    norms = jnp.sqrt(jnp.sum(v * v, axis=(1, 2), keepdims=True))
    return g[:, None, None] * v / norms


def reference(x, w, pool):
    # pure-JAX reference for correctness checking
    N, C_in, L = x.shape
    C_out, _, K = w.shape
    pad_l = (K - 1) // 2
    x_pad = jnp.pad(x, ((0, 0), (0, 0), (pad_l, K - 1 - pad_l)))
    y = jnp.zeros((N, C_out, L), jnp.float32)
    for k in range(K):
        y = y + jnp.einsum('oi,nil->nol', w[:, :, k], x_pad[:, :, k:k + L])
    y = jnp.maximum(y, 0.0)
    L_out = L // pool
    pooled = jnp.max(y[:, :, :L_out * pool].reshape(N, C_out, L_out, pool), axis=-1)
    return jnp.maximum(pooled, 0.0)


if __name__ == "__main__":
    key = jax.random.PRNGKey(0)
    N, C_IN, C_OUT, L, K, POOL = 16, 4, 8, 160, 5, 10

    k_x, k_v = jax.random.split(key)
    x = jax.random.normal(k_x, (N, C_IN, L), jnp.float32)

    # weight_norm parametrization: v ~ N(0, 0.01) (matches init_weights), and
    # g = per-output-channel ||v|| at init, so the effective weight equals v.
    v = 0.01 * jax.random.normal(k_v, (C_OUT, C_IN, K), jnp.float32)
    g = jnp.sqrt(jnp.sum(v * v, axis=(1, 2)))
    w = weight_norm_effective(v, g)

    out = jax.block_until_ready(temporal_block(x, w, pool=POOL))
    ref = reference(x, w, POOL)

    assert out.shape == (N, C_OUT, L // POOL), out.shape
    assert jnp.allclose(out, ref, atol=1e-5, rtol=1e-3), float(jnp.max(jnp.abs(out - ref)))
    print("KERNEL_OK")
</pallas_src>

<mosaic_0001>
module attributes {stable_mosaic.version = 11 : i64} {
  func.func @temporal_block_kernel(%arg0: i32, %arg1: memref<40x128xf32, #tpu.memory_space<vmem>>, %arg2: memref<5x8x4xf32, #tpu.memory_space<vmem>>, %arg3: memref<8x128xf32, #tpu.memory_space<vmem>>) attributes {dimension_semantics = [#tpu.dimension_semantics<parallel>], iteration_bounds = array<i64: 2>, scalar_prefetch = 0 : i64, scratch_operands = 0 : i64, tpu.core_type = #tpu.core_type<tc>, window_params = [{transform_indices = @transform_0, window_bounds = array<i64: 40, 128>}, {pipeline_mode = #tpu.pipeline_mode<synchronous>, transform_indices = @transform_1, window_bounds = array<i64: 5, 8, 4>}, {transform_indices = @transform_2, window_bounds = array<i64: 8, 128>}]} {
    %0 = tpu.iota {dimensions = array<i32: 1>} : vector<1x128xi32>
    %c8_i32 = arith.constant 8 : i32
    %1 = vector.broadcast %c8_i32 : i32 to vector<1x128xi32>
    %2 = arith.cmpi sge, %0, %1 : vector<1x128xi32>
    %c120_i32 = arith.constant 120 : i32
    %3 = vector.broadcast %c120_i32 : i32 to vector<1x128xi32>
    %4 = arith.cmpi slt, %0, %3 : vector<1x128xi32>
    %c32 = arith.constant 32 : index
    %c0 = arith.constant 0 : index
    %5 = vector.load %arg1[%c32, %c0] : memref<40x128xf32, #tpu.memory_space<vmem>>, vector<4x128xf32>
    %c8_i32_0 = arith.constant 8 : i32
    %6 = tpu.dynamic_rotate %5 by %c8_i32_0 dim 1 : vector<4x128xf32>, i32 -> vector<4x128xf32>
    %cst = arith.constant 0.000000e+00 : f32
    %7 = vector.shape_cast %2 : vector<1x128xi1> to vector<1x128xi1>
    %8 = vector.broadcast %7 : vector<1x128xi1> to vector<4x128xi1>
    %9 = vector.broadcast %cst : f32 to vector<4x128xf32>
    %10 = arith.select %8, %6, %9 : vector<4x128xi1>, vector<4x128xf32>
    %c0_1 = arith.constant 0 : index
    %c0_2 = arith.constant 0 : index
    %c0_3 = arith.constant 0 : index
    %11 = vector.load %arg2[%c0_1, %c0_2, %c0_3] : memref<5x8x4xf32, #tpu.memory_space<vmem>>, vector<1x8x4xf32>
    %12 = vector.shape_cast %11 : vector<1x8x4xf32> to vector<8x4xf32>
    %cst_4 = arith.constant dense<0.000000e+00> : vector<8x128xf32>
    %13 = tpu.matmul %12, %10, %cst_4 {dimension_numbers = #tpu.dot_dimension_numbers<[1], [0], [0], [1], [0, 0, 1, 1], [], []>} : vector<8x4xf32>, vector<4x128xf32>, vector<8x128xf32> -> vector<8x128xf32>
    %c36 = arith.constant 36 : index
    %c0_5 = arith.constant 0 : index
    %14 = vector.load %arg1[%c36, %c0_5] : memref<40x128xf32, #tpu.memory_space<vmem>>, vector<4x128xf32>
    %c8_i32_6 = arith.constant 8 : i32
    %15 = tpu.dynamic_rotate %14 by %c8_i32_6 dim 1 : vector<4x128xf32>, i32 -> vector<4x128xf32>
    %cst_7 = arith.constant 0.000000e+00 : f32
    %16 = vector.shape_cast %2 : vector<1x128xi1> to vector<1x128xi1>
    %17 = vector.broadcast %16 : vector<1x128xi1> to vector<4x128xi1>
    %18 = vector.broadcast %cst_7 : f32 to vector<4x128xf32>
    %19 = arith.select %17, %15, %18 : vector<4x128xi1>, vector<4x128xf32>
    %c1 = arith.constant 1 : index
    %c0_8 = arith.constant 0 : index
    %c0_9 = arith.constant 0 : index
    %20 = vector.load %arg2[%c1, %c0_8, %c0_9] : memref<5x8x4xf32, #tpu.memory_space<vmem>>, vector<1x8x4xf32>
    %21 = vector.shape_cast %20 : vector<1x8x4xf32> to vector<8x4xf32>
    %cst_10 = arith.constant dense<0.000000e+00> : vector<8x128xf32>
    %22 = tpu.matmul %21, %19, %cst_10 {dimension_numbers = #tpu.dot_dimension_numbers<[1], [0], [0], [1], [0, 0, 1, 1], [], []>} : vector<8x4xf32>, vector<4x128xf32>, vector<8x128xf32> -> vector<8x128xf32>
    %23 = arith.addf %13, %22 : vector<8x128xf32>
    %c0_11 = arith.constant 0 : index
    %c0_12 = arith.constant 0 : index
    %24 = vector.load %arg1[%c0_11, %c0_12] : memref<40x128xf32, #tpu.memory_space<vmem>>, vector<4x128xf32>
    %c2 = arith.constant 2 : index
    %c0_13 = arith.constant 0 : index
    %c0_14 = arith.constant 0 : index
    %25 = vector.load %arg2[%c2, %c0_13, %c0_14] : memref<5x8x4xf32, #tpu.memory_space<vmem>>, vector<1x8x4xf32>
    %26 = vector.shape_cast %25 : vector<1x8x4xf32> to vector<8x4xf32>
    %cst_15 = arith.constant dense<0.000000e+00> : vector<8x128xf32>
    %27 = tpu.matmul %26, %24, %cst_15 {dimension_numbers = #tpu.dot_dimension_numbers<[1], [0], [0], [1], [0, 0, 1, 1], [], []>} : vector<8x4xf32>, vector<4x128xf32>, vector<8x128xf32> -> vector<8x128xf32>
    %28 = arith.addf %23, %27 : vector<8x128xf32>
    %c4 = arith.constant 4 : index
    %c0_16 = arith.constant 0 : index
    %29 = vector.load %arg1[%c4, %c0_16] : memref<40x128xf32, #tpu.memory_space<vmem>>, vector<4x128xf32>
    %c3 = arith.constant 3 : index
    %c0_17 = arith.constant 0 : index
    %c0_18 = arith.constant 0 : index
    %30 = vector.load %arg2[%c3, %c0_17, %c0_18] : memref<5x8x4xf32, #tpu.memory_space<vmem>>, vector<1x8x4xf32>
    %31 = vector.shape_cast %30 : vector<1x8x4xf32> to vector<8x4xf32>
    %cst_19 = arith.constant dense<0.000000e+00> : vector<8x128xf32>
    %32 = tpu.matmul %31, %29, %cst_19 {dimension_numbers = #tpu.dot_dimension_numbers<[1], [0], [0], [1], [0, 0, 1, 1], [], []>} : vector<8x4xf32>, vector<4x128xf32>, vector<8x128xf32> -> vector<8x128xf32>
    %33 = arith.addf %28, %32 : vector<8x128xf32>
    %c8 = arith.constant 8 : index
    %c0_20 = arith.constant 0 : index
    %34 = vector.load %arg1[%c8, %c0_20] : memref<40x128xf32, #tpu.memory_space<vmem>>, vector<4x128xf32>
    %c4_21 = arith.constant 4 : index
    %c0_22 = arith.constant 0 : index
    %c0_23 = arith.constant 0 : index
    %35 = vector.load %arg2[%c4_21, %c0_22, %c0_23] : memref<5x8x4xf32, #tpu.memory_space<vmem>>, vector<1x8x4xf32>
    %36 = vector.shape_cast %35 : vector<1x8x4xf32> to vector<8x4xf32>
    %cst_24 = arith.constant dense<0.000000e+00> : vector<8x128xf32>
    %37 = tpu.matmul %36, %34, %cst_24 {dimension_numbers = #tpu.dot_dimension_numbers<[1], [0], [0], [1], [0, 0, 1, 1], [], []>} : vector<8x4xf32>, vector<4x128xf32>, vector<8x128xf32> -> vector<8x128xf32>
    %38 = arith.addf %33, %37 : vector<8x128xf32>
    %cst_25 = arith.constant 0.000000e+00 : f32
    %39 = vector.broadcast %cst_25 : f32 to vector<8x128xf32>
    %40 = arith.maximumf %38, %39 : vector<8x128xf32>
    %c0_26 = arith.constant 0 : index
    %c0_27 = arith.constant 0 : index
    %41 = vector.load %arg3[%c0_26, %c0_27] : memref<8x128xf32, #tpu.memory_space<vmem>>, vector<8x128xf32>
    tpu.vector_store %arg3[%c0_26, %c0_27], %40 {strides = array<i32>} : memref<8x128xf32, #tpu.memory_space<vmem>>, vector<8x128xf32>,
    %c36_28 = arith.constant 36 : index
    %c0_29 = arith.constant 0 : index
    %42 = vector.load %arg1[%c36_28, %c0_29] : memref<40x128xf32, #tpu.memory_space<vmem>>, vector<4x128xf32>
    %c8_i32_30 = arith.constant 8 : i32
    %43 = tpu.dynamic_rotate %42 by %c8_i32_30 dim 1 : vector<4x128xf32>, i32 -> vector<4x128xf32>
    %cst_31 = arith.constant 0.000000e+00 : f32
    %44 = vector.shape_cast %2 : vector<1x128xi1> to vector<1x128xi1>
    %45 = vector.broadcast %44 : vector<1x128xi1> to vector<4x128xi1>
    %46 = vector.broadcast %cst_31 : f32 to vector<4x128xf32>
    %47 = arith.select %45, %43, %46 : vector<4x128xi1>, vector<4x128xf32>
    %c0_32 = arith.constant 0 : index
    %c0_33 = arith.constant 0 : index
    %c0_34 = arith.constant 0 : index
    %48 = vector.load %arg2[%c0_32, %c0_33, %c0_34] : memref<5x8x4xf32, #tpu.memory_space<vmem>>, vector<1x8x4xf32>
    %49 = vector.shape_cast %48 : vector<1x8x4xf32> to vector<8x4xf32>
    %cst_35 = arith.constant dense<0.000000e+00> : vector<8x128xf32>
    %50 = tpu.matmul %49, %47, %cst_35 {dimension_numbers = #tpu.dot_dimension_numbers<[1], [0], [0], [1], [0, 0, 1, 1], [], []>} : vector<8x4xf32>, vector<4x128xf32>, vector<8x128xf32> -> vector<8x128xf32>
    %c0_36 = arith.constant 0 : index
    %c0_37 = arith.constant 0 : index
    %51 = vector.load %arg1[%c0_36, %c0_37] : memref<40x128xf32, #tpu.memory_space<vmem>>, vector<4x128xf32>
    %c1_38 = arith.constant 1 : index
    %c0_39 = arith.constant 0 : index
    %c0_40 = arith.constant 0 : index
    %52 = vector.load %arg2[%c1_38, %c0_39, %c0_40] : memref<5x8x4xf32, #tpu.memory_space<vmem>>, vector<1x8x4xf32>
    %53 = vector.shape_cast %52 : vector<1x8x4xf32> to vector<8x4xf32>
    %cst_41 = arith.constant dense<0.000000e+00> : vector<8x128xf32>
    %54 = tpu.matmul %53, %51, %cst_41 {dimension_numbers = #tpu.dot_dimension_numbers<[1], [0], [0], [1], [0, 0, 1, 1], [], []>} : vector<8x4xf32>, vector<4x128xf32>, vector<8x128xf32> -> vector<8x128xf32>
    %55 = arith.addf %50, %54 : vector<8x128xf32>
    %c4_42 = arith.constant 4 : index
    %c0_43 = arith.constant 0 : index
    %56 = vector.load %arg1[%c4_42, %c0_43] : memref<40x128xf32, #tpu.memory_space<vmem>>, vector<4x128xf32>
    %c2_44 = arith.constant 2 : index
    %c0_45 = arith.constant 0 : index
    %c0_46 = arith.constant 0 : index
    %57 = vector.load %arg2[%c2_44, %c0_45, %c0_46] : memref<5x8x4xf32, #tpu.memory_space<vmem>>, vector<1x8x4xf32>
    %58 = vector.shape_cast %57 : vector<1x8x4xf32> to vector<8x4xf32>
    %cst_47 = arith.constant dense<0.000000e+00> : vector<8x128xf32>
    %59 = tpu.matmul %58, %56, %cst_47 {dimension_numbers = #tpu.dot_dimension_numbers<[1], [0], [0], [1], [0, 0, 1, 1], [], []>} : vector<8x4xf32>, vector<4x128xf32>, vector<8x128xf32> -> vector<8x128xf32>
    %60 = arith.addf %55, %59 : vector<8x128xf32>
    %c8_48 = arith.constant 8 : index
    %c0_49 = arith.constant 0 : index
    %61 = vector.load %arg1[%c8_48, %c0_49] : memref<40x128xf32, #tpu.memory_space<vmem>>, vector<4x128xf32>
    %c3_50 = arith.constant 3 : index
    %c0_51 = arith.constant 0 : index
    %c0_52 = arith.constant 0 : index
    %62 = vector.load %arg2[%c3_50, %c0_51, %c0_52] : memref<5x8x4xf32, #tpu.memory_space<vmem>>, vector<1x8x4xf32>
    %63 = vector.shape_cast %62 : vector<1x8x4xf32> to vector<8x4xf32>
    %cst_53 = arith.constant dense<0.000000e+00> : vector<8x128xf32>
    %64 = tpu.matmul %63, %61, %cst_53 {dimension_numbers = #tpu.dot_dimension_numbers<[1], [0], [0], [1], [0, 0, 1, 1], [], []>} : vector<8x4xf32>, vector<4x128xf32>, vector<8x128xf32> -> vector<8x128xf32>
    %65 = arith.addf %60, %64 : vector<8x128xf32>
    %c12 = arith.constant 12 : index
    %c0_54 = arith.constant 0 : index
    %66 = vector.load %arg1[%c12, %c0_54] : memref<40x128xf32, #tpu.memory_space<vmem>>, vector<4x128xf32>
    %c4_55 = arith.constant 4 : index
    %c0_56 = arith.constant 0 : index
    %c0_57 = arith.constant 0 : index
    %67 = vector.load %arg2[%c4_55, %c0_56, %c0_57] : memref<5x8x4xf32, #tpu.memory_space<vmem>>, vector<1x8x4xf32>
    %68 = vector.shape_cast %67 : vector<1x8x4xf32> to vector<8x4xf32>
    %cst_58 = arith.constant dense<0.000000e+00> : vector<8x128xf32>
    %69 = tpu.matmul %68, %66, %cst_58 {dimension_numbers = #tpu.dot_dimension_numbers<[1], [0], [0], [1], [0, 0, 1, 1], [], []>} : vector<8x4xf32>, vector<4x128xf32>, vector<8x128xf32> -> vector<8x128xf32>
    %70 = arith.addf %65, %69 : vector<8x128xf32>
    %cst_59 = arith.constant 0.000000e+00 : f32
    %71 = vector.broadcast %cst_59 : f32 to vector<8x128xf32>
    %72 = arith.maximumf %70, %71 : vector<8x128xf32>
    %c0_60 = arith.constant 0 : index
    %c0_61 = arith.constant 0 : index
    %73 = vector.load %arg3[%c0_60, %c0_61] : memref<8x128xf32, #tpu.memory_space<vmem>>, vector<8x128xf32>
    %74 = arith.maximumf %73, %72 : vector<8x128xf32>
    %c0_62 = arith.constant 0 : index
    %c0_63 = arith.constant 0 : index
    %75 = vector.load %arg3[%c0_62, %c0_63] : memref<8x128xf32, #tpu.memory_space<vmem>>, vector<8x128xf32>
    tpu.vector_store %arg3[%c0_62, %c0_63], %74 {strides = array<i32>} : memref<8x128xf32, #tpu.memory_space<vmem>>, vector<8x128xf32>,
    %c0_64 = arith.constant 0 : index
    %c0_65 = arith.constant 0 : index
    %76 = vector.load %arg1[%c0_64, %c0_65] : memref<40x128xf32, #tpu.memory_space<vmem>>, vector<4x128xf32>
    %c0_66 = arith.constant 0 : index
    %c0_67 = arith.constant 0 : index
    %c0_68 = arith.constant 0 : index
    %77 = vector.load %arg2[%c0_66, %c0_67, %c0_68] : memref<5x8x4xf32, #tpu.memory_space<vmem>>, vector<1x8x4xf32>
    %78 = vector.shape_cast %77 : vector<1x8x4xf32> to vector<8x4xf32>
    %cst_69 = arith.constant dense<0.000000e+00> : vector<8x128xf32>
    %79 = tpu.matmul %78, %76, %cst_69 {dimension_numbers = #tpu.dot_dimension_numbers<[1], [0], [0], [1], [0, 0, 1, 1], [], []>} : vector<8x4xf32>, vector<4x128xf32>, vector<8x128xf32> -> vector<8x128xf32>
    %c4_70 = arith.constant 4 : index
    %c0_71 = arith.constant 0 : index
    %80 = vector.load %arg1[%c4_70, %c0_71] : memref<40x128xf32, #tpu.memory_space<vmem>>, vector<4x128xf32>
    %c1_72 = arith.constant 1 : index
    %c0_73 = arith.constant 0 : index
    %c0_74 = arith.constant 0 : index
    %81 = vector.load %arg2[%c1_72, %c0_73, %c0_74] : memref<5x8x4xf32, #tpu.memory_space<vmem>>, vector<1x8x4xf32>
    %82 = vector.shape_cast %81 : vector<1x8x4xf32> to vector<8x4xf32>
    %cst_75 = arith.constant dense<0.000000e+00> : vector<8x128xf32>
    %83 = tpu.matmul %82, %80, %cst_75 {dimension_numbers = #tpu.dot_dimension_numbers<[1], [0], [0], [1], [0, 0, 1, 1], [], []>} : vector<8x4xf32>, vector<4x128xf32>, vector<8x128xf32> -> vector<8x128xf32>
    %84 = arith.addf %79, %83 : vector<8x128xf32>
    %c8_76 = arith.constant 8 : index
    %c0_77 = arith.constant 0 : index
    %85 = vector.load %arg1[%c8_76, %c0_77] : memref<40x128xf32, #tpu.memory_space<vmem>>, vector<4x128xf32>
    %c2_78 = arith.constant 2 : index
    %c0_79 = arith.constant 0 : index
    %c0_80 = arith.constant 0 : index
    %86 = vector.load %arg2[%c2_78, %c0_79, %c0_80] : memref<5x8x4xf32, #tpu.memory_space<vmem>>, vector<1x8x4xf32>
    %87 = vector.shape_cast %86 : vector<1x8x4xf32> to vector<8x4xf32>
    %cst_81 = arith.constant dense<0.000000e+00> : vector<8x128xf32>
    %88 = tpu.matmul %87, %85, %cst_81 {dimension_numbers = #tpu.dot_dimension_numbers<[1], [0], [0], [1], [0, 0, 1, 1], [], []>} : vector<8x4xf32>, vector<4x128xf32>, vector<8x128xf32> -> vector<8x128xf32>
    %89 = arith.addf %84, %88 : vector<8x128xf32>
    %c12_82 = arith.constant 12 : index
    %c0_83 = arith.constant 0 : index
    %90 = vector.load %arg1[%c12_82, %c0_83] : memref<40x128xf32, #tpu.memory_space<vmem>>, vector<4x128xf32>
    %c3_84 = arith.constant 3 : index
    %c0_85 = arith.constant 0 : index
    %c0_86 = arith.constant 0 : index
    %91 = vector.load %arg2[%c3_84, %c0_85, %c0_86] : memref<5x8x4xf32, #tpu.memory_space<vmem>>, vector<1x8x4xf32>
    %92 = vector.shape_cast %91 : vector<1x8x4xf32> to vector<8x4xf32>
    %cst_87 = arith.constant dense<0.000000e+00> : vector<8x128xf32>
    %93 = tpu.matmul %92, %90, %cst_87 {dimension_numbers = #tpu.dot_dimension_numbers<[1], [0], [0], [1], [0, 0, 1, 1], [], []>} : vector<8x4xf32>, vector<4x128xf32>, vector<8x128xf32> -> vector<8x128xf32>
    %94 = arith.addf %89, %93 : vector<8x128xf32>
    %c16 = arith.constant 16 : index
    %c0_88 = arith.constant 0 : index
    %95 = vector.load %arg1[%c16, %c0_88] : memref<40x128xf32, #tpu.memory_space<vmem>>, vector<4x128xf32>
    %c4_89 = arith.constant 4 : index
    %c0_90 = arith.constant 0 : index
    %c0_91 = arith.constant 0 : index
    %96 = vector.load %arg2[%c4_89, %c0_90, %c0_91] : memref<5x8x4xf32, #tpu.memory_space<vmem>>, vector<1x8x4xf32>
    %97 = vector.shape_cast %96 : vector<1x8x4xf32> to vector<8x4xf32>
    %cst_92 = arith.constant dense<0.000000e+00> : vector<8x128xf32>
    %98 = tpu.matmul %97, %95, %cst_92 {dimension_numbers = #tpu.dot_dimension_numbers<[1], [0], [0], [1], [0, 0, 1, 1], [], []>} : vector<8x4xf32>, vector<4x128xf32>, vector<8x128xf32> -> vector<8x128xf32>
    %99 = arith.addf %94, %98 : vector<8x128xf32>
    %cst_93 = arith.constant 0.000000e+00 : f32
    %100 = vector.broadcast %cst_93 : f32 to vector<8x128xf32>
    %101 = arith.maximumf %99, %100 : vector<8x128xf32>
    %c0_94 = arith.constant 0 : index
    %c0_95 = arith.constant 0 : index
    %102 = vector.load %arg3[%c0_94, %c0_95] : memref<8x128xf32, #tpu.memory_space<vmem>>, vector<8x128xf32>
    %103 = arith.maximumf %102, %101 : vector<8x128xf32>
    %c0_96 = arith.constant 0 : index
    %c0_97 = arith.constant 0 : index
    %104 = vector.load %arg3[%c0_96, %c0_97] : memref<8x128xf32, #tpu.memory_space<vmem>>, vector<8x128xf32>
    tpu.vector_store %arg3[%c0_96, %c0_97], %103 {strides = array<i32>} : memref<8x128xf32, #tpu.memory_space<vmem>>, vector<8x128xf32>,
    %c4_98 = arith.constant 4 : index
    %c0_99 = arith.constant 0 : index
    %105 = vector.load %arg1[%c4_98, %c0_99] : memref<40x128xf32, #tpu.memory_space<vmem>>, vector<4x128xf32>
    %c0_100 = arith.constant 0 : index
    %c0_101 = arith.constant 0 : index
    %c0_102 = arith.constant 0 : index
    %106 = vector.load %arg2[%c0_100, %c0_101, %c0_102] : memref<5x8x4xf32, #tpu.memory_space<vmem>>, vector<1x8x4xf32>
    %107 = vector.shape_cast %106 : vector<1x8x4xf32> to vector<8x4xf32>
    %cst_103 = arith.constant dense<0.000000e+00> : vector<8x128xf32>
    %108 = tpu.matmul %107, %105, %cst_103 {dimension_numbers = #tpu.dot_dimension_numbers<[1], [0], [0], [1], [0, 0, 1, 1], [], []>} : vector<8x4xf32>, vector<4x128xf32>, vector<8x128xf32> -> vector<8x128xf32>
    %c8_104 = arith.constant 8 : index
    %c0_105 = arith.constant 0 : index
    %109 = vector.load %arg1[%c8_104, %c0_105] : memref<40x128xf32, #tpu.memory_space<vmem>>, vector<4x128xf32>
    %c1_106 = arith.constant 1 : index
    %c0_107 = arith.constant 0 : index
    %c0_108 = arith.constant 0 : index
    %110 = vector.load %arg2[%c1_106, %c0_107, %c0_108] : memref<5x8x4xf32, #tpu.memory_space<vmem>>, vector<1x8x4xf32>
    %111 = vector.shape_cast %110 : vector<1x8x4xf32> to vector<8x4xf32>
    %cst_109 = arith.constant dense<0.000000e+00> : vector<8x128xf32>
    %112 = tpu.matmul %111, %109, %cst_109 {dimension_numbers = #tpu.dot_dimension_numbers<[1], [0], [0], [1], [0, 0, 1, 1], [], []>} : vector<8x4xf32>, vector<4x128xf32>, vector<8x128xf32> -> vector<8x128xf32>
    %113 = arith.addf %108, %112 : vector<8x128xf32>
    %c12_110 = arith.constant 12 : index
    %c0_111 = arith.constant 0 : index
    %114 = vector.load %arg1[%c12_110, %c0_111] : memref<40x128xf32, #tpu.memory_space<vmem>>, vector<4x128xf32>
    %c2_112 = arith.constant 2 : index
    %c0_113 = arith.constant 0 : index
    %c0_114 = arith.constant 0 : index
    %115 = vector.load %arg2[%c2_112, %c0_113, %c0_114] : memref<5x8x4xf32, #tpu.memory_space<vmem>>, vector<1x8x4xf32>
    %116 = vector.shape_cast %115 : vector<1x8x4xf32> to vector<8x4xf32>
    %cst_115 = arith.constant dense<0.000000e+00> : vector<8x128xf32>
    %117 = tpu.matmul %116, %114, %cst_115 {dimension_numbers = #tpu.dot_dimension_numbers<[1], [0], [0], [1], [0, 0, 1, 1], [], []>} : vector<8x4xf32>, vector<4x128xf32>, vector<8x128xf32> -> vector<8x128xf32>
    %118 = arith.addf %113, %117 : vector<8x128xf32>
    %c16_116 = arith.constant 16 : index
    %c0_117 = arith.constant 0 : index
    %119 = vector.load %arg1[%c16_116, %c0_117] : memref<40x128xf32, #tpu.memory_space<vmem>>, vector<4x128xf32>
    %c3_118 = arith.constant 3 : index
    %c0_119 = arith.constant 0 : index
    %c0_120 = arith.constant 0 : index
    %120 = vector.load %arg2[%c3_118, %c0_119, %c0_120] : memref<5x8x4xf32, #tpu.memory_space<vmem>>, vector<1x8x4xf32>
    %121 = vector.shape_cast %120 : vector<1x8x4xf32> to vector<8x4xf32>
    %cst_121 = arith.constant dense<0.000000e+00> : vector<8x128xf32>
    %122 = tpu.matmul %121, %119, %cst_121 {dimension_numbers = #tpu.dot_dimension_numbers<[1], [0], [0], [1], [0, 0, 1, 1], [], []>} : vector<8x4xf32>, vector<4x128xf32>, vector<8x128xf32> -> vector<8x128xf32>
    %123 = arith.addf %118, %122 : vector<8x128xf32>
    %c20 = arith.constant 20 : index
    %c0_122 = arith.constant 0 : index
    %124 = vector.load %arg1[%c20, %c0_122] : memref<40x128xf32, #tpu.memory_space<vmem>>, vector<4x128xf32>
    %c4_123 = arith.constant 4 : index
    %c0_124 = arith.constant 0 : index
    %c0_125 = arith.constant 0 : index
    %125 = vector.load %arg2[%c4_123, %c0_124, %c0_125] : memref<5x8x4xf32, #tpu.memory_space<vmem>>, vector<1x8x4xf32>
    %126 = vector.shape_cast %125 : vector<1x8x4xf32> to vector<8x4xf32>
    %cst_126 = arith.constant dense<0.000000e+00> : vector<8x128xf32>
    %127 = tpu.matmul %126, %124, %cst_126 {dimension_numbers = #tpu.dot_dimension_numbers<[1], [0], [0], [1], [0, 0, 1, 1], [], []>} : vector<8x4xf32>, vector<4x128xf32>, vector<8x128xf32> -> vector<8x128xf32>
    %128 = arith.addf %123, %127 : vector<8x128xf32>
    %cst_127 = arith.constant 0.000000e+00 : f32
    %129 = vector.broadcast %cst_127 : f32 to vector<8x128xf32>
    %130 = arith.maximumf %128, %129 : vector<8x128xf32>
    %c0_128 = arith.constant 0 : index
    %c0_129 = arith.constant 0 : index
    %131 = vector.load %arg3[%c0_128, %c0_129] : memref<8x128xf32, #tpu.memory_space<vmem>>, vector<8x128xf32>
    %132 = arith.maximumf %131, %130 : vector<8x128xf32>
    %c0_130 = arith.constant 0 : index
    %c0_131 = arith.constant 0 : index
    %133 = vector.load %arg3[%c0_130, %c0_131] : memref<8x128xf32, #tpu.memory_space<vmem>>, vector<8x128xf32>
    tpu.vector_store %arg3[%c0_130, %c0_131], %132 {strides = array<i32>} : memref<8x128xf32, #tpu.memory_space<vmem>>, vector<8x128xf32>,
    %c8_132 = arith.constant 8 : index
    %c0_133 = arith.constant 0 : index
    %134 = vector.load %arg1[%c8_132, %c0_133] : memref<40x128xf32, #tpu.memory_space<vmem>>, vector<4x128xf32>
    %c0_134 = arith.constant 0 : index
    %c0_135 = arith.constant 0 : index
    %c0_136 = arith.constant 0 : index
    %135 = vector.load %arg2[%c0_134, %c0_135, %c0_136] : memref<5x8x4xf32, #tpu.memory_space<vmem>>, vector<1x8x4xf32>
    %136 = vector.shape_cast %135 : vector<1x8x4xf32> to vector<8x4xf32>
    %cst_137 = arith.constant dense<0.000000e+00> : vector<8x128xf32>
    %137 = tpu.matmul %136, %134, %cst_137 {dimension_numbers = #tpu.dot_dimension_numbers<[1], [0], [0], [1], [0, 0, 1, 1], [], []>} : vector<8x4xf32>, vector<4x128xf32>, vector<8x128xf32> -> vector<8x128xf32>
    %c12_138 = arith.constant 12 : index
    %c0_139 = arith.constant 0 : index
    %138 = vector.load %arg1[%c12_138, %c0_139] : memref<40x128xf32, #tpu.memory_space<vmem>>, vector<4x128xf32>
    %c1_140 = arith.constant 1 : index
    %c0_141 = arith.constant 0 : index
    %c0_142 = arith.constant 0 : index
    %139 = vector.load %arg2[%c1_140, %c0_141, %c0_142] : memref<5x8x4xf32, #tpu.memory_space<vmem>>, vector<1x8x4xf32>
    %140 = vector.shape_cast %139 : vector<1x8x4xf32> to vector<8x4xf32>
    %cst_143 = arith.constant dense<0.000000e+00> : vector<8x128xf32>
    %141 = tpu.matmul %140, %138, %cst_143 {dimension_numbers = #tpu.dot_dimension_numbers<[1], [0], [0], [1], [0, 0, 1, 1], [], []>} : vector<8x4xf32>, vector<4x128xf32>, vector<8x128xf32> -> vector<8x128xf32>
    %142 = arith.addf %137, %141 : vector<8x128xf32>
    %c16_144 = arith.constant 16 : index
    %c0_145 = arith.constant 0 : index
    %143 = vector.load %arg1[%c16_144, %c0_145] : memref<40x128xf32, #tpu.memory_space<vmem>>, vector<4x128xf32>
    %c2_146 = arith.constant 2 : index
    %c0_147 = arith.constant 0 : index
    %c0_148 = arith.constant 0 : index
    %144 = vector.load %arg2[%c2_146, %c0_147, %c0_148] : memref<5x8x4xf32, #tpu.memory_space<vmem>>, vector<1x8x4xf32>
    %145 = vector.shape_cast %144 : vector<1x8x4xf32> to vector<8x4xf32>
    %cst_149 = arith.constant dense<0.000000e+00> : vector<8x128xf32>
    %146 = tpu.matmul %145, %143, %cst_149 {dimension_numbers = #tpu.dot_dimension_numbers<[1], [0], [0], [1], [0, 0, 1, 1], [], []>} : vector<8x4xf32>, vector<4x128xf32>, vector<8x128xf32> -> vector<8x128xf32>
    %147 = arith.addf %142, %146 : vector<8x128xf32>
    %c20_150 = arith.constant 20 : index
    %c0_151 = arith.constant 0 : index
    %148 = vector.load %arg1[%c20_150, %c0_151] : memref<40x128xf32, #tpu.memory_space<vmem>>, vector<4x128xf32>
    %c3_152 = arith.constant 3 : index
    %c0_153 = arith.constant 0 : index
    %c0_154 = arith.constant 0 : index
    %149 = vector.load %arg2[%c3_152, %c0_153, %c0_154] : memref<5x8x4xf32, #tpu.memory_space<vmem>>, vector<1x8x4xf32>
    %150 = vector.shape_cast %149 : vector<1x8x4xf32> to vector<8x4xf32>
    %cst_155 = arith.constant dense<0.000000e+00> : vector<8x128xf32>
    %151 = tpu.matmul %150, %148, %cst_155 {dimension_numbers = #tpu.dot_dimension_numbers<[1], [0], [0], [1], [0, 0, 1, 1], [], []>} : vector<8x4xf32>, vector<4x128xf32>, vector<8x128xf32> -> vector<8x128xf32>
    %152 = arith.addf %147, %151 : vector<8x128xf32>
    %c24 = arith.constant 24 : index
    %c0_156 = arith.constant 0 : index
    %153 = vector.load %arg1[%c24, %c0_156] : memref<40x128xf32, #tpu.memory_space<vmem>>, vector<4x128xf32>
    %c4_157 = arith.constant 4 : index
    %c0_158 = arith.constant 0 : index
    %c0_159 = arith.constant 0 : index
    %154 = vector.load %arg2[%c4_157, %c0_158, %c0_159] : memref<5x8x4xf32, #tpu.memory_space<vmem>>, vector<1x8x4xf32>
    %155 = vector.shape_cast %154 : vector<1x8x4xf32> to vector<8x4xf32>
    %cst_160 = arith.constant dense<0.000000e+00> : vector<8x128xf32>
    %156 = tpu.matmul %155, %153, %cst_160 {dimension_numbers = #tpu.dot_dimension_numbers<[1], [0], [0], [1], [0, 0, 1, 1], [], []>} : vector<8x4xf32>, vector<4x128xf32>, vector<8x128xf32> -> vector<8x128xf32>
    %157 = arith.addf %152, %156 : vector<8x128xf32>
    %cst_161 = arith.constant 0.000000e+00 : f32
    %158 = vector.broadcast %cst_161 : f32 to vector<8x128xf32>
    %159 = arith.maximumf %157, %158 : vector<8x128xf32>
    %c0_162 = arith.constant 0 : index
    %c0_163 = arith.constant 0 : index
    %160 = vector.load %arg3[%c0_162, %c0_163] : memref<8x128xf32, #tpu.memory_space<vmem>>, vector<8x128xf32>
    %161 = arith.maximumf %160, %159 : vector<8x128xf32>
    %c0_164 = arith.constant 0 : index
    %c0_165 = arith.constant 0 : index
    %162 = vector.load %arg3[%c0_164, %c0_165] : memref<8x128xf32, #tpu.memory_space<vmem>>, vector<8x128xf32>
    tpu.vector_store %arg3[%c0_164, %c0_165], %161 {strides = array<i32>} : memref<8x128xf32, #tpu.memory_space<vmem>>, vector<8x128xf32>,
    %c12_166 = arith.constant 12 : index
    %c0_167 = arith.constant 0 : index
    %163 = vector.load %arg1[%c12_166, %c0_167] : memref<40x128xf32, #tpu.memory_space<vmem>>, vector<4x128xf32>
    %c0_168 = arith.constant 0 : index
    %c0_169 = arith.constant 0 : index
    %c0_170 = arith.constant 0 : index
    %164 = vector.load %arg2[%c0_168, %c0_169, %c0_170] : memref<5x8x4xf32, #tpu.memory_space<vmem>>, vector<1x8x4xf32>
    %165 = vector.shape_cast %164 : vector<1x8x4xf32> to vector<8x4xf32>
    %cst_171 = arith.constant dense<0.000000e+00> : vector<8x128xf32>
    %166 = tpu.matmul %165, %163, %cst_171 {dimension_numbers = #tpu.dot_dimension_numbers<[1], [0], [0], [1], [0, 0, 1, 1], [], []>} : vector<8x4xf32>, vector<4x128xf32>, vector<8x128xf32> -> vector<8x128xf32>
    %c16_172 = arith.constant 16 : index
    %c0_173 = arith.constant 0 : index
    %167 = vector.load %arg1[%c16_172, %c0_173] : memref<40x128xf32, #tpu.memory_space<vmem>>, vector<4x128xf32>
    %c1_174 = arith.constant 1 : index
    %c0_175 = arith.constant 0 : index
    %c0_176 = arith.constant 0 : index
    %168 = vector.load %arg2[%c1_174, %c0_175, %c0_176] : memref<5x8x4xf32, #tpu.memory_space<vmem>>, vector<1x8x4xf32>
    %169 = vector.shape_cast %168 : vector<1x8x4xf32> to vector<8x4xf32>
    %cst_177 = arith.constant dense<0.000000e+00> : vector<8x128xf32>
    %170 = tpu.matmul %169, %167, %cst_177 {dimension_numbers = #tpu.dot_dimension_numbers<[1], [0], [0], [1], [0, 0, 1, 1], [], []>} : vector<8x4xf32>, vector<4x128xf32>, vector<8x128xf32> -> vector<8x128xf32>
    %171 = arith.addf %166, %170 : vector<8x128xf32>
    %c20_178 = arith.constant 20 : index
    %c0_179 = arith.constant 0 : index
    %172 = vector.load %arg1[%c20_178, %c0_179] : memref<40x128xf32, #tpu.memory_space<vmem>>, vector<4x128xf32>
    %c2_180 = arith.constant 2 : index
    %c0_181 = arith.constant 0 : index
    %c0_182 = arith.constant 0 : index
    %173 = vector.load %arg2[%c2_180, %c0_181, %c0_182] : memref<5x8x4xf32, #tpu.memory_space<vmem>>, vector<1x8x4xf32>
    %174 = vector.shape_cast %173 : vector<1x8x4xf32> to vector<8x4xf32>
    %cst_183 = arith.constant dense<0.000000e+00> : vector<8x128xf32>
    %175 = tpu.matmul %174, %172, %cst_183 {dimension_numbers = #tpu.dot_dimension_numbers<[1], [0], [0], [1], [0, 0, 1, 1], [], []>} : vector<8x4xf32>, vector<4x128xf32>, vector<8x128xf32> -> vector<8x128xf32>
    %176 = arith.addf %171, %175 : vector<8x128xf32>
    %c24_184 = arith.constant 24 : index
    %c0_185 = arith.constant 0 : index
    %177 = vector.load %arg1[%c24_184, %c0_185] : memref<40x128xf32, #tpu.memory_space<vmem>>, vector<4x128xf32>
    %c3_186 = arith.constant 3 : index
    %c0_187 = arith.constant 0 : index
    %c0_188 = arith.constant 0 : index
    %178 = vector.load %arg2[%c3_186, %c0_187, %c0_188] : memref<5x8x4xf32, #tpu.memory_space<vmem>>, vector<1x8x4xf32>
    %179 = vector.shape_cast %178 : vector<1x8x4xf32> to vector<8x4xf32>
    %cst_189 = arith.constant dense<0.000000e+00> : vector<8x128xf32>
    %180 = tpu.matmul %179, %177, %cst_189 {dimension_numbers = #tpu.dot_dimension_numbers<[1], [0], [0], [1], [0, 0, 1, 1], [], []>} : vector<8x4xf32>, vector<4x128xf32>, vector<8x128xf32> -> vector<8x128xf32>
    %181 = arith.addf %176, %180 : vector<8x128xf32>
    %c28 = arith.constant 28 : index
    %c0_190 = arith.constant 0 : index
    %182 = vector.load %arg1[%c28, %c0_190] : memref<40x128xf32, #tpu.memory_space<vmem>>, vector<4x128xf32>
    %c4_191 = arith.constant 4 : index
    %c0_192 = arith.constant 0 : index
    %c0_193 = arith.constant 0 : index
    %183 = vector.load %arg2[%c4_191, %c0_192, %c0_193] : memref<5x8x4xf32, #tpu.memory_space<vmem>>, vector<1x8x4xf32>
    %184 = vector.shape_cast %183 : vector<1x8x4xf32> to vector<8x4xf32>
    %cst_194 = arith.constant dense<0.000000e+00> : vector<8x128xf32>
    %185 = tpu.matmul %184, %182, %cst_194 {dimension_numbers = #tpu.dot_dimension_numbers<[1], [0], [0], [1], [0, 0, 1, 1], [], []>} : vector<8x4xf32>, vector<4x128xf32>, vector<8x128xf32> -> vector<8x128xf32>
    %186 = arith.addf %181, %185 : vector<8x128xf32>
    %cst_195 = arith.constant 0.000000e+00 : f32
    %187 = vector.broadcast %cst_195 : f32 to vector<8x128xf32>
    %188 = arith.maximumf %186, %187 : vector<8x128xf32>
    %c0_196 = arith.constant 0 : index
    %c0_197 = arith.constant 0 : index
    %189 = vector.load %arg3[%c0_196, %c0_197] : memref<8x128xf32, #tpu.memory_space<vmem>>, vector<8x128xf32>
    %190 = arith.maximumf %189, %188 : vector<8x128xf32>
    %c0_198 = arith.constant 0 : index
    %c0_199 = arith.constant 0 : index
    %191 = vector.load %arg3[%c0_198, %c0_199] : memref<8x128xf32, #tpu.memory_space<vmem>>, vector<8x128xf32>
    tpu.vector_store %arg3[%c0_198, %c0_199], %190 {strides = array<i32>} : memref<8x128xf32, #tpu.memory_space<vmem>>, vector<8x128xf32>,
    %c16_200 = arith.constant 16 : index
    %c0_201 = arith.constant 0 : index
    %192 = vector.load %arg1[%c16_200, %c0_201] : memref<40x128xf32, #tpu.memory_space<vmem>>, vector<4x128xf32>
    %c0_202 = arith.constant 0 : index
    %c0_203 = arith.constant 0 : index
    %c0_204 = arith.constant 0 : index
    %193 = vector.load %arg2[%c0_202, %c0_203, %c0_204] : memref<5x8x4xf32, #tpu.memory_space<vmem>>, vector<1x8x4xf32>
    %194 = vector.shape_cast %193 : vector<1x8x4xf32> to vector<8x4xf32>
    %cst_205 = arith.constant dense<0.000000e+00> : vector<8x128xf32>
    %195 = tpu.matmul %194, %192, %cst_205 {dimension_numbers = #tpu.dot_dimension_numbers<[1], [0], [0], [1], [0, 0, 1, 1], [], []>} : vector<8x4xf32>, vector<4x128xf32>, vector<8x128xf32> -> vector<8x128xf32>
    %c20_206 = arith.constant 20 : index
    %c0_207 = arith.constant 0 : index
    %196 = vector.load %arg1[%c20_206, %c0_207] : memref<40x128xf32, #tpu.memory_space<vmem>>, vector<4x128xf32>
    %c1_208 = arith.constant 1 : index
    %c0_209 = arith.constant 0 : index
    %c0_210 = arith.constant 0 : index
    %197 = vector.load %arg2[%c1_208, %c0_209, %c0_210] : memref<5x8x4xf32, #tpu.memory_space<vmem>>, vector<1x8x4xf32>
    %198 = vector.shape_cast %197 : vector<1x8x4xf32> to vector<8x4xf32>
    %cst_211 = arith.constant dense<0.000000e+00> : vector<8x128xf32>
    %199 = tpu.matmul %198, %196, %cst_211 {dimension_numbers = #tpu.dot_dimension_numbers<[1], [0], [0], [1], [0, 0, 1, 1], [], []>} : vector<8x4xf32>, vector<4x128xf32>, vector<8x128xf32> -> vector<8x128xf32>
    %200 = arith.addf %195, %199 : vector<8x128xf32>
    %c24_212 = arith.constant 24 : index
    %c0_213 = arith.constant 0 : index
    %201 = vector.load %arg1[%c24_212, %c0_213] : memref<40x128xf32, #tpu.memory_space<vmem>>, vector<4x128xf32>
    %c2_214 = arith.constant 2 : index
    %c0_215 = arith.constant 0 : index
    %c0_216 = arith.constant 0 : index
    %202 = vector.load %arg2[%c2_214, %c0_215, %c0_216] : memref<5x8x4xf32, #tpu.memory_space<vmem>>, vector<1x8x4xf32>
    %203 = vector.shape_cast %202 : vector<1x8x4xf32> to vector<8x4xf32>
    %cst_217 = arith.constant dense<0.000000e+00> : vector<8x128xf32>
    %204 = tpu.matmul %203, %201, %cst_217 {dimension_numbers = #tpu.dot_dimension_numbers<[1], [0], [0], [1], [0, 0, 1, 1], [], []>} : vector<8x4xf32>, vector<4x128xf32>, vector<8x128xf32> -> vector<8x128xf32>
    %205 = arith.addf %200, %204 : vector<8x128xf32>
    %c28_218 = arith.constant 28 : index
    %c0_219 = arith.constant 0 : index
    %206 = vector.load %arg1[%c28_218, %c0_219] : memref<40x128xf32, #tpu.memory_space<vmem>>, vector<4x128xf32>
    %c3_220 = arith.constant 3 : index
    %c0_221 = arith.constant 0 : index
    %c0_222 = arith.constant 0 : index
    %207 = vector.load %arg2[%c3_220, %c0_221, %c0_222] : memref<5x8x4xf32, #tpu.memory_space<vmem>>, vector<1x8x4xf32>
    %208 = vector.shape_cast %207 : vector<1x8x4xf32> to vector<8x4xf32>
    %cst_223 = arith.constant dense<0.000000e+00> : vector<8x128xf32>
    %209 = tpu.matmul %208, %206, %cst_223 {dimension_numbers = #tpu.dot_dimension_numbers<[1], [0], [0], [1], [0, 0, 1, 1], [], []>} : vector<8x4xf32>, vector<4x128xf32>, vector<8x128xf32> -> vector<8x128xf32>
    %210 = arith.addf %205, %209 : vector<8x128xf32>
    %c32_224 = arith.constant 32 : index
    %c0_225 = arith.constant 0 : index
    %211 = vector.load %arg1[%c32_224, %c0_225] : memref<40x128xf32, #tpu.memory_space<vmem>>, vector<4x128xf32>
    %c4_226 = arith.constant 4 : index
    %c0_227 = arith.constant 0 : index
    %c0_228 = arith.constant 0 : index
    %212 = vector.load %arg2[%c4_226, %c0_227, %c0_228] : memref<5x8x4xf32, #tpu.memory_space<vmem>>, vector<1x8x4xf32>
    %213 = vector.shape_cast %212 : vector<1x8x4xf32> to vector<8x4xf32>
    %cst_229 = arith.constant dense<0.000000e+00> : vector<8x128xf32>
    %214 = tpu.matmul %213, %211, %cst_229 {dimension_numbers = #tpu.dot_dimension_numbers<[1], [0], [0], [1], [0, 0, 1, 1], [], []>} : vector<8x4xf32>, vector<4x128xf32>, vector<8x128xf32> -> vector<8x128xf32>
    %215 = arith.addf %210, %214 : vector<8x128xf32>
    %cst_230 = arith.constant 0.000000e+00 : f32
    %216 = vector.broadcast %cst_230 : f32 to vector<8x128xf32>
    %217 = arith.maximumf %215, %216 : vector<8x128xf32>
    %c0_231 = arith.constant 0 : index
    %c0_232 = arith.constant 0 : index
    %218 = vector.load %arg3[%c0_231, %c0_232] : memref<8x128xf32, #tpu.memory_space<vmem>>, vector<8x128xf32>
    %219 = arith.maximumf %218, %217 : vector<8x128xf32>
    %c0_233 = arith.constant 0 : index
    %c0_234 = arith.constant 0 : index
    %220 = vector.load %arg3[%c0_233, %c0_234] : memref<8x128xf32, #tpu.memory_space<vmem>>, vector<8x128xf32>
    tpu.vector_store %arg3[%c0_233, %c0_234], %219 {strides = array<i32>} : memref<8x128xf32, #tpu.memory_space<vmem>>, vector<8x128xf32>,
    %c20_235 = arith.constant 20 : index
    %c0_236 = arith.constant 0 : index
    %221 = vector.load %arg1[%c20_235, %c0_236] : memref<40x128xf32, #tpu.memory_space<vmem>>, vector<4x128xf32>
    %c0_237 = arith.constant 0 : index
    %c0_238 = arith.constant 0 : index
    %c0_239 = arith.constant 0 : index
    %222 = vector.load %arg2[%c0_237, %c0_238, %c0_239] : memref<5x8x4xf32, #tpu.memory_space<vmem>>, vector<1x8x4xf32>
    %223 = vector.shape_cast %222 : vector<1x8x4xf32> to vector<8x4xf32>
    %cst_240 = arith.constant dense<0.000000e+00> : vector<8x128xf32>
    %224 = tpu.matmul %223, %221, %cst_240 {dimension_numbers = #tpu.dot_dimension_numbers<[1], [0], [0], [1], [0, 0, 1, 1], [], []>} : vector<8x4xf32>, vector<4x128xf32>, vector<8x128xf32> -> vector<8x128xf32>
    %c24_241 = arith.constant 24 : index
    %c0_242 = arith.constant 0 : index
    %225 = vector.load %arg1[%c24_241, %c0_242] : memref<40x128xf32, #tpu.memory_space<vmem>>, vector<4x128xf32>
    %c1_243 = arith.constant 1 : index
    %c0_244 = arith.constant 0 : index
    %c0_245 = arith.constant 0 : index
    %226 = vector.load %arg2[%c1_243, %c0_244, %c0_245] : memref<5x8x4xf32, #tpu.memory_space<vmem>>, vector<1x8x4xf32>
    %227 = vector.shape_cast %226 : vector<1x8x4xf32> to vector<8x4xf32>
    %cst_246 = arith.constant dense<0.000000e+00> : vector<8x128xf32>
    %228 = tpu.matmul %227, %225, %cst_246 {dimension_numbers = #tpu.dot_dimension_numbers<[1], [0], [0], [1], [0, 0, 1, 1], [], []>} : vector<8x4xf32>, vector<4x128xf32>, vector<8x128xf32> -> vector<8x128xf32>
    %229 = arith.addf %224, %228 : vector<8x128xf32>
    %c28_247 = arith.constant 28 : index
    %c0_248 = arith.constant 0 : index
    %230 = vector.load %arg1[%c28_247, %c0_248] : memref<40x128xf32, #tpu.memory_space<vmem>>, vector<4x128xf32>
    %c2_249 = arith.constant 2 : index
    %c0_250 = arith.constant 0 : index
    %c0_251 = arith.constant 0 : index
    %231 = vector.load %arg2[%c2_249, %c0_250, %c0_251] : memref<5x8x4xf32, #tpu.memory_space<vmem>>, vector<1x8x4xf32>
    %232 = vector.shape_cast %231 : vector<1x8x4xf32> to vector<8x4xf32>
    %cst_252 = arith.constant dense<0.000000e+00> : vector<8x128xf32>
    %233 = tpu.matmul %232, %230, %cst_252 {dimension_numbers = #tpu.dot_dimension_numbers<[1], [0], [0], [1], [0, 0, 1, 1], [], []>} : vector<8x4xf32>, vector<4x128xf32>, vector<8x128xf32> -> vector<8x128xf32>
    %234 = arith.addf %229, %233 : vector<8x128xf32>
    %c32_253 = arith.constant 32 : index
    %c0_254 = arith.constant 0 : index
    %235 = vector.load %arg1[%c32_253, %c0_254] : memref<40x128xf32, #tpu.memory_space<vmem>>, vector<4x128xf32>
    %c3_255 = arith.constant 3 : index
    %c0_256 = arith.constant 0 : index
    %c0_257 = arith.constant 0 : index
    %236 = vector.load %arg2[%c3_255, %c0_256, %c0_257] : memref<5x8x4xf32, #tpu.memory_space<vmem>>, vector<1x8x4xf32>
    %237 = vector.shape_cast %236 : vector<1x8x4xf32> to vector<8x4xf32>
    %cst_258 = arith.constant dense<0.000000e+00> : vector<8x128xf32>
    %238 = tpu.matmul %237, %235, %cst_258 {dimension_numbers = #tpu.dot_dimension_numbers<[1], [0], [0], [1], [0, 0, 1, 1], [], []>} : vector<8x4xf32>, vector<4x128xf32>, vector<8x128xf32> -> vector<8x128xf32>
    %239 = arith.addf %234, %238 : vector<8x128xf32>
    %c36_259 = arith.constant 36 : index
    %c0_260 = arith.constant 0 : index
    %240 = vector.load %arg1[%c36_259, %c0_260] : memref<40x128xf32, #tpu.memory_space<vmem>>, vector<4x128xf32>
    %c4_261 = arith.constant 4 : index
    %c0_262 = arith.constant 0 : index
    %c0_263 = arith.constant 0 : index
    %241 = vector.load %arg2[%c4_261, %c0_262, %c0_263] : memref<5x8x4xf32, #tpu.memory_space<vmem>>, vector<1x8x4xf32>
    %242 = vector.shape_cast %241 : vector<1x8x4xf32> to vector<8x4xf32>
    %cst_264 = arith.constant dense<0.000000e+00> : vector<8x128xf32>
    %243 = tpu.matmul %242, %240, %cst_264 {dimension_numbers = #tpu.dot_dimension_numbers<[1], [0], [0], [1], [0, 0, 1, 1], [], []>} : vector<8x4xf32>, vector<4x128xf32>, vector<8x128xf32> -> vector<8x128xf32>
    %244 = arith.addf %239, %243 : vector<8x128xf32>
    %cst_265 = arith.constant 0.000000e+00 : f32
    %245 = vector.broadcast %cst_265 : f32 to vector<8x128xf32>
    %246 = arith.maximumf %244, %245 : vector<8x128xf32>
    %c0_266 = arith.constant 0 : index
    %c0_267 = arith.constant 0 : index
    %247 = vector.load %arg3[%c0_266, %c0_267] : memref<8x128xf32, #tpu.memory_space<vmem>>, vector<8x128xf32>
    %248 = arith.maximumf %247, %246 : vector<8x128xf32>
    %c0_268 = arith.constant 0 : index
    %c0_269 = arith.constant 0 : index
    %249 = vector.load %arg3[%c0_268, %c0_269] : memref<8x128xf32, #tpu.memory_space<vmem>>, vector<8x128xf32>
    tpu.vector_store %arg3[%c0_268, %c0_269], %248 {strides = array<i32>} : memref<8x128xf32, #tpu.memory_space<vmem>>, vector<8x128xf32>,
    %c24_270 = arith.constant 24 : index
    %c0_271 = arith.constant 0 : index
    %250 = vector.load %arg1[%c24_270, %c0_271] : memref<40x128xf32, #tpu.memory_space<vmem>>, vector<4x128xf32>
    %c0_272 = arith.constant 0 : index
    %c0_273 = arith.constant 0 : index
    %c0_274 = arith.constant 0 : index
    %251 = vector.load %arg2[%c0_272, %c0_273, %c0_274] : memref<5x8x4xf32, #tpu.memory_space<vmem>>, vector<1x8x4xf32>
    %252 = vector.shape_cast %251 : vector<1x8x4xf32> to vector<8x4xf32>
    %cst_275 = arith.constant dense<0.000000e+00> : vector<8x128xf32>
    %253 = tpu.matmul %252, %250, %cst_275 {dimension_numbers = #tpu.dot_dimension_numbers<[1], [0], [0], [1], [0, 0, 1, 1], [], []>} : vector<8x4xf32>, vector<4x128xf32>, vector<8x128xf32> -> vector<8x128xf32>
    %c28_276 = arith.constant 28 : index
    %c0_277 = arith.constant 0 : index
    %254 = vector.load %arg1[%c28_276, %c0_277] : memref<40x128xf32, #tpu.memory_space<vmem>>, vector<4x128xf32>
    %c1_278 = arith.constant 1 : index
    %c0_279 = arith.constant 0 : index
    %c0_280 = arith.constant 0 : index
    %255 = vector.load %arg2[%c1_278, %c0_279, %c0_280] : memref<5x8x4xf32, #tpu.memory_space<vmem>>, vector<1x8x4xf32>
    %256 = vector.shape_cast %255 : vector<1x8x4xf32> to vector<8x4xf32>
    %cst_281 = arith.constant dense<0.000000e+00> : vector<8x128xf32>
    %257 = tpu.matmul %256, %254, %cst_281 {dimension_numbers = #tpu.dot_dimension_numbers<[1], [0], [0], [1], [0, 0, 1, 1], [], []>} : vector<8x4xf32>, vector<4x128xf32>, vector<8x128xf32> -> vector<8x128xf32>
    %258 = arith.addf %253, %257 : vector<8x128xf32>
    %c32_282 = arith.constant 32 : index
    %c0_283 = arith.constant 0 : index
    %259 = vector.load %arg1[%c32_282, %c0_283] : memref<40x128xf32, #tpu.memory_space<vmem>>, vector<4x128xf32>
    %c2_284 = arith.constant 2 : index
    %c0_285 = arith.constant 0 : index
    %c0_286 = arith.constant 0 : index
    %260 = vector.load %arg2[%c2_284, %c0_285, %c0_286] : memref<5x8x4xf32, #tpu.memory_space<vmem>>, vector<1x8x4xf32>
    %261 = vector.shape_cast %260 : vector<1x8x4xf32> to vector<8x4xf32>
    %cst_287 = arith.constant dense<0.000000e+00> : vector<8x128xf32>
    %262 = tpu.matmul %261, %259, %cst_287 {dimension_numbers = #tpu.dot_dimension_numbers<[1], [0], [0], [1], [0, 0, 1, 1], [], []>} : vector<8x4xf32>, vector<4x128xf32>, vector<8x128xf32> -> vector<8x128xf32>
    %263 = arith.addf %258, %262 : vector<8x128xf32>
    %c36_288 = arith.constant 36 : index
    %c0_289 = arith.constant 0 : index
    %264 = vector.load %arg1[%c36_288, %c0_289] : memref<40x128xf32, #tpu.memory_space<vmem>>, vector<4x128xf32>
    %c3_290 = arith.constant 3 : index
    %c0_291 = arith.constant 0 : index
    %c0_292 = arith.constant 0 : index
    %265 = vector.load %arg2[%c3_290, %c0_291, %c0_292] : memref<5x8x4xf32, #tpu.memory_space<vmem>>, vector<1x8x4xf32>
    %266 = vector.shape_cast %265 : vector<1x8x4xf32> to vector<8x4xf32>
    %cst_293 = arith.constant dense<0.000000e+00> : vector<8x128xf32>
    %267 = tpu.matmul %266, %264, %cst_293 {dimension_numbers = #tpu.dot_dimension_numbers<[1], [0], [0], [1], [0, 0, 1, 1], [], []>} : vector<8x4xf32>, vector<4x128xf32>, vector<8x128xf32> -> vector<8x128xf32>
    %268 = arith.addf %263, %267 : vector<8x128xf32>
    %c0_294 = arith.constant 0 : index
    %c0_295 = arith.constant 0 : index
    %269 = vector.load %arg1[%c0_294, %c0_295] : memref<40x128xf32, #tpu.memory_space<vmem>>, vector<4x128xf32>
    %c120_i32_296 = arith.constant 120 : i32
    %270 = tpu.dynamic_rotate %269 by %c120_i32_296 dim 1 : vector<4x128xf32>, i32 -> vector<4x128xf32>
    %cst_297 = arith.constant 0.000000e+00 : f32
    %271 = vector.shape_cast %4 : vector<1x128xi1> to vector<1x128xi1>
    %272 = vector.broadcast %271 : vector<1x128xi1> to vector<4x128xi1>
    %273 = vector.broadcast %cst_297 : f32 to vector<4x128xf32>
    %274 = arith.select %272, %270, %273 : vector<4x128xi1>, vector<4x128xf32>
    %c4_298 = arith.constant 4 : index
    %c0_299 = arith.constant 0 : index
    %c0_300 = arith.constant 0 : index
    %275 = vector.load %arg2[%c4_298, %c0_299, %c0_300] : memref<5x8x4xf32, #tpu.memory_space<vmem>>, vector<1x8x4xf32>
    %276 = vector.shape_cast %275 : vector<1x8x4xf32> to vector<8x4xf32>
    %cst_301 = arith.constant dense<0.000000e+00> : vector<8x128xf32>
    %277 = tpu.matmul %276, %274, %cst_301 {dimension_numbers = #tpu.dot_dimension_numbers<[1], [0], [0], [1], [0, 0, 1, 1], [], []>} : vector<8x4xf32>, vector<4x128xf32>, vector<8x128xf32> -> vector<8x128xf32>
    %278 = arith.addf %268, %277 : vector<8x128xf32>
    %cst_302 = arith.constant 0.000000e+00 : f32
    %279 = vector.broadcast %cst_302 : f32 to vector<8x128xf32>
    %280 = arith.maximumf %278, %279 : vector<8x128xf32>
    %c0_303 = arith.constant 0 : index
    %c0_304 = arith.constant 0 : index
    %281 = vector.load %arg3[%c0_303, %c0_304] : memref<8x128xf32, #tpu.memory_space<vmem>>, vector<8x128xf32>
    %282 = arith.maximumf %281, %280 : vector<8x128xf32>
    %c0_305 = arith.constant 0 : index
    %c0_306 = arith.constant 0 : index
    %283 = vector.load %arg3[%c0_305, %c0_306] : memref<8x128xf32, #tpu.memory_space<vmem>>, vector<8x128xf32>
    tpu.vector_store %arg3[%c0_305, %c0_306], %282 {strides = array<i32>} : memref<8x128xf32, #tpu.memory_space<vmem>>, vector<8x128xf32>,
    %c28_307 = arith.constant 28 : index
    %c0_308 = arith.constant 0 : index
    %284 = vector.load %arg1[%c28_307, %c0_308] : memref<40x128xf32, #tpu.memory_space<vmem>>, vector<4x128xf32>
    %c0_309 = arith.constant 0 : index
    %c0_310 = arith.constant 0 : index
    %c0_311 = arith.constant 0 : index
    %285 = vector.load %arg2[%c0_309, %c0_310, %c0_311] : memref<5x8x4xf32, #tpu.memory_space<vmem>>, vector<1x8x4xf32>
    %286 = vector.shape_cast %285 : vector<1x8x4xf32> to vector<8x4xf32>
    %cst_312 = arith.constant dense<0.000000e+00> : vector<8x128xf32>
    %287 = tpu.matmul %286, %284, %cst_312 {dimension_numbers = #tpu.dot_dimension_numbers<[1], [0], [0], [1], [0, 0, 1, 1], [], []>} : vector<8x4xf32>, vector<4x128xf32>, vector<8x128xf32> -> vector<8x128xf32>
    %c32_313 = arith.constant 32 : index
    %c0_314 = arith.constant 0 : index
    %288 = vector.load %arg1[%c32_313, %c0_314] : memref<40x128xf32, #tpu.memory_space<vmem>>, vector<4x128xf32>
    %c1_315 = arith.constant 1 : index
    %c0_316 = arith.constant 0 : index
    %c0_317 = arith.constant 0 : index
    %289 = vector.load %arg2[%c1_315, %c0_316, %c0_317] : memref<5x8x4xf32, #tpu.memory_space<vmem>>, vector<1x8x4xf32>
    %290 = vector.shape_cast %289 : vector<1x8x4xf32> to vector<8x4xf32>
    %cst_318 = arith.constant dense<0.000000e+00> : vector<8x128xf32>
    %291 = tpu.matmul %290, %288, %cst_318 {dimension_numbers = #tpu.dot_dimension_numbers<[1], [0], [0], [1], [0, 0, 1, 1], [], []>} : vector<8x4xf32>, vector<4x128xf32>, vector<8x128xf32> -> vector<8x128xf32>
    %292 = arith.addf %287, %291 : vector<8x128xf32>
    %c36_319 = arith.constant 36 : index
    %c0_320 = arith.constant 0 : index
    %293 = vector.load %arg1[%c36_319, %c0_320] : memref<40x128xf32, #tpu.memory_space<vmem>>, vector<4x128xf32>
    %c2_321 = arith.constant 2 : index
    %c0_322 = arith.constant 0 : index
    %c0_323 = arith.constant 0 : index
    %294 = vector.load %arg2[%c2_321, %c0_322, %c0_323] : memref<5x8x4xf32, #tpu.memory_space<vmem>>, vector<1x8x4xf32>
    %295 = vector.shape_cast %294 : vector<1x8x4xf32> to vector<8x4xf32>
    %cst_324 = arith.constant dense<0.000000e+00> : vector<8x128xf32>
    %296 = tpu.matmul %295, %293, %cst_324 {dimension_numbers = #tpu.dot_dimension_numbers<[1], [0], [0], [1], [0, 0, 1, 1], [], []>} : vector<8x4xf32>, vector<4x128xf32>, vector<8x128xf32> -> vector<8x128xf32>
    %297 = arith.addf %292, %296 : vector<8x128xf32>
    %c0_325 = arith.constant 0 : index
    %c0_326 = arith.constant 0 : index
    %298 = vector.load %arg1[%c0_325, %c0_326] : memref<40x128xf32, #tpu.memory_space<vmem>>, vector<4x128xf32>
    %c120_i32_327 = arith.constant 120 : i32
    %299 = tpu.dynamic_rotate %298 by %c120_i32_327 dim 1 : vector<4x128xf32>, i32 -> vector<4x128xf32>
    %cst_328 = arith.constant 0.000000e+00 : f32
    %300 = vector.shape_cast %4 : vector<1x128xi1> to vector<1x128xi1>
    %301 = vector.broadcast %300 : vector<1x128xi1> to vector<4x128xi1>
    %302 = vector.broadcast %cst_328 : f32 to vector<4x128xf32>
    %303 = arith.select %301, %299, %302 : vector<4x128xi1>, vector<4x128xf32>
    %c3_329 = arith.constant 3 : index
    %c0_330 = arith.constant 0 : index
    %c0_331 = arith.constant 0 : index
    %304 = vector.load %arg2[%c3_329, %c0_330, %c0_331] : memref<5x8x4xf32, #tpu.memory_space<vmem>>, vector<1x8x4xf32>
    %305 = vector.shape_cast %304 : vector<1x8x4xf32> to vector<8x4xf32>
    %cst_332 = arith.constant dense<0.000000e+00> : vector<8x128xf32>
    %306 = tpu.matmul %305, %303, %cst_332 {dimension_numbers = #tpu.dot_dimension_numbers<[1], [0], [0], [1], [0, 0, 1, 1], [], []>} : vector<8x4xf32>, vector<4x128xf32>, vector<8x128xf32> -> vector<8x128xf32>
    %307 = arith.addf %297, %306 : vector<8x128xf32>
    %c4_333 = arith.constant 4 : index
    %c0_334 = arith.constant 0 : index
    %308 = vector.load %arg1[%c4_333, %c0_334] : memref<40x128xf32, #tpu.memory_space<vmem>>, vector<4x128xf32>
    %c120_i32_335 = arith.constant 120 : i32
    %309 = tpu.dynamic_rotate %308 by %c120_i32_335 dim 1 : vector<4x128xf32>, i32 -> vector<4x128xf32>
    %cst_336 = arith.constant 0.000000e+00 : f32
    %310 = vector.shape_cast %4 : vector<1x128xi1> to vector<1x128xi1>
    %311 = vector.broadcast %310 : vector<1x128xi1> to vector<4x128xi1>
    %312 = vector.broadcast %cst_336 : f32 to vector<4x128xf32>
    %313 = arith.select %311, %309, %312 : vector<4x128xi1>, vector<4x128xf32>
    %c4_337 = arith.constant 4 : index
    %c0_338 = arith.constant 0 : index
    %c0_339 = arith.constant 0 : index
    %314 = vector.load %arg2[%c4_337, %c0_338, %c0_339] : memref<5x8x4xf32, #tpu.memory_space<vmem>>, vector<1x8x4xf32>
    %315 = vector.shape_cast %314 : vector<1x8x4xf32> to vector<8x4xf32>
    %cst_340 = arith.constant dense<0.000000e+00> : vector<8x128xf32>
    %316 = tpu.matmul %315, %313, %cst_340 {dimension_numbers = #tpu.dot_dimension_numbers<[1], [0], [0], [1], [0, 0, 1, 1], [], []>} : vector<8x4xf32>, vector<4x128xf32>, vector<8x128xf32> -> vector<8x128xf32>
    %317 = arith.addf %307, %316 : vector<8x128xf32>
    %cst_341 = arith.constant 0.000000e+00 : f32
    %318 = vector.broadcast %cst_341 : f32 to vector<8x128xf32>
    %319 = arith.maximumf %317, %318 : vector<8x128xf32>
    %c0_342 = arith.constant 0 : index
    %c0_343 = arith.constant 0 : index
    %320 = vector.load %arg3[%c0_342, %c0_343] : memref<8x128xf32, #tpu.memory_space<vmem>>, vector<8x128xf32>
    %321 = arith.maximumf %320, %319 : vector<8x128xf32>
    %c0_344 = arith.constant 0 : index
    %c0_345 = arith.constant 0 : index
    %322 = vector.load %arg3[%c0_344, %c0_345] : memref<8x128xf32, #tpu.memory_space<vmem>>, vector<8x128xf32>
    tpu.vector_store %arg3[%c0_344, %c0_345], %321 {strides = array<i32>} : memref<8x128xf32, #tpu.memory_space<vmem>>, vector<8x128xf32>,
    return
  }
  func.func @transform_0(%arg0: i32) -> (i32, i32) {
    %c0_i32 = arith.constant 0 : i32
    %c0_i32_0 = arith.constant 0 : i32
    return %c0_i32, %arg0 : i32, i32
  }
  func.func @transform_1(%arg0: i32) -> (i32, i32, i32) {
    %c0_i32 = arith.constant 0 : i32
    %c0_i32_0 = arith.constant 0 : i32
    %c0_i32_1 = arith.constant 0 : i32
    %c0_i32_2 = arith.constant 0 : i32
    return %c0_i32, %c0_i32_0, %c0_i32_1 : i32, i32, i32
  }
  func.func @transform_2(%arg0: i32) -> (i32, i32) {
    %c0_i32 = arith.constant 0 : i32
    %c0_i32_0 = arith.constant 0 : i32
    return %c0_i32, %arg0 : i32, i32
  }
}

</mosaic_0001>

<llo_original>
// kernel: tpu_custom_call.1
$region0: #{tpu_custom_call.1}
  #allocation0 [shape = 'u32[]', space=smem, size = 0x4, offset = 0x4, fixed_abs, tag = 'smem constant byte address 0x4 - core index']
  #allocation1 [shape = 'u32[72,128]{1,0:T(1,128)}', space=vmem, size = 0x9000, scoped, tag = 'internal scratch']
  %s0 = inlined_call_operand.hbm [shape: f32[40,256], index: 0, kind: input, shape index: {}]
  %s1 = inlined_call_operand.vmem [shape: f32[5,8,4], index: 1, kind: input, shape index: {}]
  %s2 = inlined_call_operand.hbm [shape: f32[8,256], index: 2, kind: output, shape index: {}]
  %s3 = sld [smem:[#allocation0]]
  $region45: #{tpu_custom_call.1} parent=0
    _
  %s5 = ssub.s32 1, %s3
  %s6 = scalar_select 0, %s5, %s3
  $region1: #{tpu_custom_call.1} parent=0
    #allocation2 [shape = 'u8[40960]{0}', space=vmem, size = 0xa000, scoped, tag = 'input window, operand 0']
    #allocation3 [shape = 's32[2]{0}', space=sflag, size = 0x8, scoped, tag = 'scoped memory for tpu_custom_call.1']
    #allocation4 [shape = 's32[2]{0}', space=sflag, size = 0x8, scoped, tag = 'scoped memory for tpu_custom_call.1']
    #allocation5 [shape = 'u8[8192]{0}', space=vmem, size = 0x2000, scoped, tag = 'output window, operand 0']
    %7 = vsyncpa [#allocation3], 0
    %s8 = scalar_lea.sflag [#allocation3], 1
    %9 = vsyncpa %s8, 0
    %10 = vsyncpa [#allocation4], 0
    %s11 = scalar_lea.sflag [#allocation4], 1
    %12 = vsyncpa %s11, 0
    loop: start=0, step=1, limit=4
    $region2: #{tpu_custom_call.1} parent=1 // loop_pre_header
      _
    $region3: #{tpu_custom_call.1} parent=1 // loop_header
      %s14 = sphi 0, %s18
      %p15 = scmp.ge.s32.totalorder %s14, 4
      %s24 = sphi 0, %s26
      %s27 = sphi 0, %s24
      %s28 = sphi 0, %s27
      %s44 = sphi 0, %s28
      %s48 = sphi 0, %s48
      %s50 = sphi 0, %s48
      %s51 = sphi 0, %s50
      %s65 = sphi 0, %s51
      %s71 = sphi 0, %s73
      %s74 = sphi 0, %s71
      %s75 = sphi 0, %s74
      %s91 = sphi 0, %s75
    $region4: #{tpu_custom_call.1} parent=1 // loop_header_branch
      %17 = sbr.rel (%p15) target = $region8
    $region5: #{tpu_custom_call.1} parent=1 // loop_body
      %s19 = ssub.s32 %s14, 1
      %s20 = ssub.s32 %s14, 2
      %s21 = sadd.s32 %s14, 1
      %s22 = ssub.s32 %s14, %s21
      %p23 = scmp.eq.s32.totalorder %s22, 0
      %s25 = sadd.s32 %s24, 1
      %s26 = scalar_select %p23, %s24, %s25
      %p29 = pneg %p23
      %p30 = scmp.eq.s32.totalorder %s14, 1
      %p31 = por %p29, %p30
      %p32 = scmp.ne.s32.totalorder %s24, %s27
      %p33 = scmp.eq.s32.totalorder %s14, 0
      %p34 = por %p32, %p33
      %p35 = scmp.ne.s32.totalorder %s24, %s27
      %p36 = scmp.eq.s32.totalorder %s19, 1
      %p37 = por %p35, %p36
      %p38 = scmp.ne.s32.totalorder %s27, %s28
      %p39 = scmp.eq.s32.totalorder %s19, 0
      %p40 = por %p38, %p39
      %p41 = scmp.ne.s32.totalorder %s27, %s28
      %p42 = scmp.eq.s32.totalorder %s20, 1
      %p43 = por %p41, %p42
      %p45 = scmp.ne.s32.totalorder %s28, %s44
      %p46 = scmp.eq.s32.totalorder %s20, 0
      %p47 = por %p45, %p46
      %s49 = sadd.s32 %s48, 1
      %p52 = scmp.eq.s32.totalorder %s14, 1
      %p53 = scmp.ne.s32.totalorder %s48, %s50
      %p54 = scmp.eq.s32.totalorder %s14, 0
      %p55 = por %p53, %p54
      %p56 = scmp.ne.s32.totalorder %s48, %s50
      %p57 = scmp.eq.s32.totalorder %s19, 1
      %p58 = por %p56, %p57
      %p59 = scmp.ne.s32.totalorder %s50, %s51
      %p60 = scmp.eq.s32.totalorder %s19, 0
      %p61 = por %p59, %p60
      %p62 = scmp.ne.s32.totalorder %s50, %s51
      %p63 = scmp.eq.s32.totalorder %s20, 1
      %p64 = por %p62, %p63
      %p66 = scmp.ne.s32.totalorder %s51, %s65
      %p67 = scmp.eq.s32.totalorder %s20, 0
      %p68 = por %p66, %p67
      %s69 = ssub.s32 %s14, %s21
      %p70 = scmp.eq.s32.totalorder %s69, 0
      %s72 = sadd.s32 %s71, 1
      %s73 = scalar_select %p70, %s71, %s72
      %p76 = pneg %p70
      %p77 = scmp.eq.s32.totalorder %s14, 1
      %p78 = por %p76, %p77
      %p79 = scmp.ne.s32.totalorder %s71, %s74
      %p80 = scmp.eq.s32.totalorder %s14, 0
      %p81 = por %p79, %p80
      %p82 = scmp.ne.s32.totalorder %s71, %s74
      %p83 = scmp.eq.s32.totalorder %s19, 1
      %p84 = por %p82, %p83
      %p85 = scmp.ne.s32.totalorder %s74, %s75
      %p86 = scmp.eq.s32.totalorder %s19, 0
      %p87 = por %p85, %p86
      %p88 = scmp.ne.s32.totalorder %s74, %s75
      %p89 = scmp.eq.s32.totalorder %s20, 1
      %p90 = por %p88, %p89
      %p92 = scmp.ne.s32.totalorder %s75, %s91
      %p93 = scmp.eq.s32.totalorder %s20, 0
      %p94 = por %p92, %p93
      %p95 = scmp.le.s32.totalorder 1, %s14
      %p96 = scmp.lt.s32.totalorder %s14, 3
      %p97 = pnand %p95, %p96
      %p98 = pneg %p97
      // Predicated region
      $region9: #{tpu_custom_call.1} parent=5 // pred_check
        _
      $region10: #{tpu_custom_call.1} parent=5 // pred_check_branch
        %100 = sbr.rel (%p97) target = $region12
      $region11: #{tpu_custom_call.1} parent=5 // pred_region
        %s101 = ssub.s32 %s14, 1
        // Predicated region
        $region13: #{tpu_custom_call.1} parent=11 // pred_check
          %p102 = pneg %p61
        $region14: #{tpu_custom_call.1} parent=11 // pred_check_branch
          %104 = sbr.rel (%p102) target = $region16
        $region15: #{tpu_custom_call.1} parent=11 // pred_region
          _
        $region16: #{tpu_custom_call.1} parent=11 // pred_fallthru
          _
      $region12: #{tpu_custom_call.1} parent=5 // pred_fallthru
        _
      %p105 = scmp.lt.s32.totalorder %s14, 2
      // Predicated region
      $region17: #{tpu_custom_call.1} parent=5 // pred_check
        %p106 = pneg %p105
      $region18: #{tpu_custom_call.1} parent=5 // pred_check_branch
        %108 = sbr.rel (%p106) target = $region20
      $region19: #{tpu_custom_call.1} parent=5 // pred_region
        // Predicated region
        $region21: #{tpu_custom_call.1} parent=19 // pred_check
          %p109 = pneg %p34
        $region22: #{tpu_custom_call.1} parent=19 // pred_check_branch
          %111 = sbr.rel (%p109) target = $region24
        $region23: #{tpu_custom_call.1} parent=19 // pred_region
          %s112 = sand.u32 %s24, 1
          %s113 = scalar_lea.sflag [#allocation3], %s112
          %s114 = sand.u32 %s24, 1
          %s115 = smul.addr %s114, 40
          %s116 = scalar_lea.vmem [#allocation2], %s115
          %118 = vsyncadd %s113, 0
          %s119 = smul.addr %s14, 8
          %s120 = scalar_lea.hbm %s0, %s119
          %s121 = sshll.u32 %s120, 4
          %s122 = int_to_ptr.hbm [resolvable:$true] %s121
          %s123 = sshll.u32 %s116, 4
          %s124 = int_to_ptr.vmem [resolvable:$true] %s123
          %129 = dma.hbm_to_vmem [thread:$0]  %s122, 640, %s124, %s113, 256, 128, 8
        $region24: #{tpu_custom_call.1} parent=19 // pred_fallthru
          _
      $region20: #{tpu_custom_call.1} parent=5 // pred_fallthru
        _
      %p130 = scmp.le.s32.totalorder 1, %s14
      %p131 = scmp.lt.s32.totalorder %s14, 3
      %p132 = pnand %p130, %p131
      %p133 = pneg %p132
      // Predicated region
      $region25: #{tpu_custom_call.1} parent=5 // pred_check
        _
      $region26: #{tpu_custom_call.1} parent=5 // pred_check_branch
        %135 = sbr.rel (%p132) target = $region28
      $region27: #{tpu_custom_call.1} parent=5 // pred_region
        %s136 = ssub.s32 %s14, 1
        %s137 = sand.u32 %s27, 1
        %s138 = scalar_lea.sflag [#allocation3], %s137
        %s139 = sand.u32 %s27, 1
        %s140 = smul.addr %s139, 40
        %s141 = scalar_lea.vmem [#allocation2], %s140
        // Predicated region
        $region29: #{tpu_custom_call.1} parent=27 // pred_check
          %p142 = pneg %p40
        $region30: #{tpu_custom_call.1} parent=27 // pred_check_branch
          %144 = sbr.rel (%p142) target = $region32
        $region31: #{tpu_custom_call.1} parent=27 // pred_region
          %146 = dma.done %s138, 640
        $region32: #{tpu_custom_call.1} parent=27 // pred_fallthru
          _
        %s147 = sand.u32 %s27, 1
        %s148 = scalar_lea.sflag [#allocation3], %s147
        %s149 = sand.u32 %s27, 1
        %s150 = smul.addr %s149, 40
        %s151 = scalar_lea.vmem [#allocation2], %s150
        %p152 = pneg %p40
        %p153 = pneg %p37
        %p154 = pneg %p61
        %p155 = pneg %p58
        %p156 = pneg %p87
        %p157 = pneg %p84
        %s158 = sand.u32 %s74, 1
        %s159 = scalar_lea.sflag [#allocation4], %s158
        %s160 = sand.u32 %s74, 1
        %s161 = smul.addr %s160, 8
        %s162 = scalar_lea.vmem [#allocation5], %s161
        %v163 = vlaneseq
        %v164 = vand.u32 %v163, 127
        %vm165 = vcmp.ge.s32.totalorder %v164, 8
        %vm166 = vcmp.lt.s32.totalorder %v164, 120
        %v167 = vld [vmem:[%s141 + $0x20] sm:$0xf]
        %168 = vrot.lane.b32.xlu0 %v167, 8
        %v169 = vpop.permute.xlu0 %168
        %v170 = vsel %vm165, 1, 0
        %vm171 = vcmp.eq.s32.totalorder %v170, 1
        %v172 = vsel %vm171, %v169, 0.0
        %v173 = vld [vmem:[%s1] sm:$0xff]
        %v174 = vld [vmem:[%s141 + $0x24] sm:$0xf]
        %175 = vrot.lane.b32.xlu0 %v174, 8
        %v176 = vpop.permute.xlu0 %175
        %v177 = vsel %vm171, %v176, 0.0
        %s178 = scalar_lea.vmem %s1, 8
        %v179 = vld [vmem:[%s178] sm:$0xff]
        %vm180 = vcmask 31744
        %v182 = vsel %vm180, %v179, 0
        %vm184 = vcmask 1043456
        %v186 = vsel %vm184, %v177, 0
        %188 = vmatpush.msra.mxu0 0.0
        %189 = vmatpush.msra.mxu0 0.0
        %190 = vmatpush.msra.mxu0 0.0
        %191 = vmatpush.msra.mxu0 0.0
        %192 = vmatpush.msra.mxu0 0.0
        %193 = vmatpush.msra.mxu0 0.0
        %194 = vmatpush.msra.mxu0 0.0
        %195 = vmatpush.msra.mxu0 0.0
        %196 = vmatpush.msra.mxu0 0.0
        %197 = vmatpush.msra.mxu0 0.0
        %198 = vmatpush.msra.mxu0 0.0
        %199 = vmatpush.msra.mxu0 0.0
        %200 = vmatpush.msra.mxu0 0.0
        %201 = vmatpush.msra.mxu0 0.0
        %202 = vmatpush.msra.mxu0 0.0
        %203 = vmatpush.msra.mxu0 %v186
        %204 = vmatmul.f32.gmra.mxu0 %v182
        %v205 = vpop.f32.mrf.mxu0
        %v206 = vadd.f32 0.0, %v205
        %207 = vdwg.mxu0
        %v209 = vsel %vm180, %v173, 0
        %v212 = vsel %vm184, %v172, 0
        %214 = vmatpush.msra.mxu0 0.0
        %215 = vmatpush.msra.mxu0 0.0
        %216 = vmatpush.msra.mxu0 0.0
        %217 = vmatpush.msra.mxu0 0.0
        %218 = vmatpush.msra.mxu0 0.0
        %219 = vmatpush.msra.mxu0 0.0
        %220 = vmatpush.msra.mxu0 0.0
        %221 = vmatpush.msra.mxu0 0.0
        %222 = vmatpush.msra.mxu0 0.0
        %223 = vmatpush.msra.mxu0 0.0
        %224 = vmatpush.msra.mxu0 0.0
        %225 = vmatpush.msra.mxu0 0.0
        %226 = vmatpush.msra.mxu0 0.0
        %227 = vmatpush.msra.mxu0 0.0
        %228 = vmatpush.msra.mxu0 0.0
        %229 = vmatpush.msra.mxu0 %v212
        %230 = vmatmul.f32.gmra.mxu0 %v209
        %v231 = vpop.f32.mrf.mxu0
        %v232 = vadd.f32 %v206, %v231
        %233 = vdwg.mxu0
        %v234 = vld [vmem:[%s141] sm:$0xf]
        %s235 = scalar_lea.vmem %s1, 16
        %v236 = vld [vmem:[%s235] sm:$0xff]
        %v238 = vsel %vm180, %v236, 0
        %v241 = vsel %vm184, %v234, 0
        %243 = vmatpush.msra.mxu0 0.0
        %244 = vmatpush.msra.mxu0 0.0
        %245 = vmatpush.msra.mxu0 0.0
        %246 = vmatpush.msra.mxu0 0.0
        %247 = vmatpush.msra.mxu0 0.0
        %248 = vmatpush.msra.mxu0 0.0
        %249 = vmatpush.msra.mxu0 0.0
        %250 = vmatpush.msra.mxu0 0.0
        %251 = vmatpush.msra.mxu0 0.0
        %252 = vmatpush.msra.mxu0 0.0
        %253 = vmatpush.msra.mxu0 0.0
        %254 = vmatpush.msra.mxu0 0.0
        %255 = vmatpush.msra.mxu0 0.0
        %256 = vmatpush.msra.mxu0 0.0
        %257 = vmatpush.msra.mxu0 0.0
        %258 = vmatpush.msra.mxu0 %v241
        %259 = vmatmul.f32.gmra.mxu0 %v238
        %v260 = vpop.f32.mrf.mxu0
        %v261 = vadd.f32 0.0, %v260
        %262 = vdwg.mxu0
        %v263 = vadd.f32 %v232, %v261
        %v264 = vld [vmem:[%s141 + $0x4] sm:$0xf]
        %s265 = scalar_lea.vmem %s1, 24
        %v266 = vld [vmem:[%s265] sm:$0xff]
        %v268 = vsel %vm180, %v266, 0
        %v271 = vsel %vm184, %v264, 0
        %273 = vmatpush.msra.mxu0 0.0
        %274 = vmatpush.msra.mxu0 0.0
        %275 = vmatpush.msra.mxu0 0.0
        %276 = vmatpush.msra.mxu0 0.0
        %277 = vmatpush.msra.mxu0 0.0
        %278 = vmatpush.msra.mxu0 0.0
        %279 = vmatpush.msra.mxu0 0.0
        %280 = vmatpush.msra.mxu0 0.0
        %281 = vmatpush.msra.mxu0 0.0
        %282 = vmatpush.msra.mxu0 0.0
        %283 = vmatpush.msra.mxu0 0.0
        %284 = vmatpush.msra.mxu0 0.0
        %285 = vmatpush.msra.mxu0 0.0
        %286 = vmatpush.msra.mxu0 0.0
        %287 = vmatpush.msra.mxu0 0.0
        %288 = vmatpush.msra.mxu0 %v271
        %289 = vmatmul.f32.gmra.mxu0 %v268
        %v290 = vpop.f32.mrf.mxu0
        %v291 = vadd.f32 0.0, %v290
        %292 = vdwg.mxu0
        %v293 = vadd.f32 %v263, %v291
        %v294 = vld [vmem:[%s141 + $0x8] sm:$0xf]
        %s295 = scalar_lea.vmem %s1, 32
        %v296 = vld [vmem:[%s295] sm:$0xff]
        %v298 = vsel %vm180, %v296, 0
        %v301 = vsel %vm184, %v294, 0
        %303 = vmatpush.msra.mxu0 0.0
        %304 = vmatpush.msra.mxu0 0.0
        %305 = vmatpush.msra.mxu0 0.0
        %306 = vmatpush.msra.mxu0 0.0
        %307 = vmatpush.msra.mxu0 0.0
        %308 = vmatpush.msra.mxu0 0.0
        %309 = vmatpush.msra.mxu0 0.0
        %310 = vmatpush.msra.mxu0 0.0
        %311 = vmatpush.msra.mxu0 0.0
        %312 = vmatpush.msra.mxu0 0.0
        %313 = vmatpush.msra.mxu0 0.0
        %314 = vmatpush.msra.mxu0 0.0
        %315 = vmatpush.msra.mxu0 0.0
        %316 = vmatpush.msra.mxu0 0.0
        %317 = vmatpush.msra.mxu0 0.0
        %318 = vmatpush.msra.mxu0 %v301
        %319 = vmatmul.f32.gmra.mxu0 %v298
        %v320 = vpop.f32.mrf.mxu0
        %v321 = vadd.f32 0.0, %v320
        %322 = vdwg.mxu0
        %v323 = vadd.f32 %v293, %v321
        %v324 = vmax.f32 %v323, 0.0
        %325 = vst [vmem:[%s162] sm:$0xff] %v324
        %v326 = vld [vmem:[%s141 + $0x24] sm:$0xf]
        %327 = vrot.lane.b32.xlu0 %v326, 8
        %v328 = vpop.permute.xlu0 %327
        %v329 = vsel %vm171, %v328, 0.0
        %v330 = vld [vmem:[%s1] sm:$0xff]
        %v331 = vld [vmem:[%s141] sm:$0xf]
        %v332 = vld [vmem:[%s178] sm:$0xff]
        %v334 = vsel %vm180, %v332, 0
        %v337 = vsel %vm184, %v331, 0
        %339 = vmatpush.msra.mxu0 0.0
        %340 = vmatpush.msra.mxu0 0.0
        %341 = vmatpush.msra.mxu0 0.0
        %342 = vmatpush.msra.mxu0 0.0
        %343 = vmatpush.msra.mxu0 0.0
        %344 = vmatpush.msra.mxu0 0.0
        %345 = vmatpush.msra.mxu0 0.0
        %346 = vmatpush.msra.mxu0 0.0
        %347 = vmatpush.msra.mxu0 0.0
        %348 = vmatpush.msra.mxu0 0.0
        %349 = vmatpush.msra.mxu0 0.0
        %350 = vmatpush.msra.mxu0 0.0
        %351 = vmatpush.msra.mxu0 0.0
        %352 = vmatpush.msra.mxu0 0.0
        %353 = vmatpush.msra.mxu0 0.0
        %354 = vmatpush.msra.mxu0 %v337
        %355 = vmatmul.f32.gmra.mxu0 %v334
        %v356 = vpop.f32.mrf.mxu0
        %v357 = vadd.f32 0.0, %v356
        %358 = vdwg.mxu0
        %v360 = vsel %vm180, %v330, 0
        %v363 = vsel %vm184, %v329, 0
        %365 = vmatpush.msra.mxu0 0.0
        %366 = vmatpush.msra.mxu0 0.0
        %367 = vmatpush.msra.mxu0 0.0
        %368 = vmatpush.msra.mxu0 0.0
        %369 = vmatpush.msra.mxu0 0.0
        %370 = vmatpush.msra.mxu0 0.0
        %371 = vmatpush.msra.mxu0 0.0
        %372 = vmatpush.msra.mxu0 0.0
        %373 = vmatpush.msra.mxu0 0.0
        %374 = vmatpush.msra.mxu0 0.0
        %375 = vmatpush.msra.mxu0 0.0
        %376 = vmatpush.msra.mxu0 0.0
        %377 = vmatpush.msra.mxu0 0.0
        %378 = vmatpush.msra.mxu0 0.0
        %379 = vmatpush.msra.mxu0 0.0
        %380 = vmatpush.msra.mxu0 %v363
        %381 = vmatmul.f32.gmra.mxu0 %v360
        %v382 = vpop.f32.mrf.mxu0
        %v383 = vadd.f32 %v357, %v382
        %384 = vdwg.mxu0
        %v385 = vld [vmem:[%s141 + $0x4] sm:$0xf]
        %v386 = vld [vmem:[%s235] sm:$0xff]
        %v388 = vsel %vm180, %v386, 0
        %v391 = vsel %vm184, %v385, 0
        %393 = vmatpush.msra.mxu0 0.0
        %394 = vmatpush.msra.mxu0 0.0
        %395 = vmatpush.msra.mxu0 0.0
        %396 = vmatpush.msra.mxu0 0.0
        %397 = vmatpush.msra.mxu0 0.0
        %398 = vmatpush.msra.mxu0 0.0
        %399 = vmatpush.msra.mxu0 0.0
        %400 = vmatpush.msra.mxu0 0.0
        %401 = vmatpush.msra.mxu0 0.0
        %402 = vmatpush.msra.mxu0 0.0
        %403 = vmatpush.msra.mxu0 0.0
        %404 = vmatpush.msra.mxu0 0.0
        %405 = vmatpush.msra.mxu0 0.0
        %406 = vmatpush.msra.mxu0 0.0
        %407 = vmatpush.msra.mxu0 0.0
        %408 = vmatpush.msra.mxu0 %v391
        %409 = vmatmul.f32.gmra.mxu0 %v388
        %v410 = vpop.f32.mrf.mxu0
        %v411 = vadd.f32 0.0, %v410
        %412 = vdwg.mxu0
        %v413 = vadd.f32 %v383, %v411
        %v414 = vld [vmem:[%s141 + $0x8] sm:$0xf]
        %v415 = vld [vmem:[%s265] sm:$0xff]
        %v417 = vsel %vm180, %v415, 0
        %v420 = vsel %vm184, %v414, 0
        %422 = vmatpush.msra.mxu0 0.0
        %423 = vmatpush.msra.mxu0 0.0
        %424 = vmatpush.msra.mxu0 0.0
        %425 = vmatpush.msra.mxu0 0.0
        %426 = vmatpush.msra.mxu0 0.0
        %427 = vmatpush.msra.mxu0 0.0
        %428 = vmatpush.msra.mxu0 0.0
        %429 = vmatpush.msra.mxu0 0.0
        %430 = vmatpush.msra.mxu0 0.0
        %431 = vmatpush.msra.mxu0 0.0
        %432 = vmatpush.msra.mxu0 0.0
        %433 = vmatpush.msra.mxu0 0.0
        %434 = vmatpush.msra.mxu0 0.0
        %435 = vmatpush.msra.mxu0 0.0
        %436 = vmatpush.msra.mxu0 0.0
        %437 = vmatpush.msra.mxu0 %v420
        %438 = vmatmul.f32.gmra.mxu0 %v417
        %v439 = vpop.f32.mrf.mxu0
        %v440 = vadd.f32 0.0, %v439
        %441 = vdwg.mxu0
        %v442 = vadd.f32 %v413, %v440
        %v443 = vld [vmem:[%s141 + $0xc] sm:$0xf]
        %v444 = vld [vmem:[%s295] sm:$0xff]
        %v446 = vsel %vm180, %v444, 0
        %v449 = vsel %vm184, %v443, 0
        %451 = vmatpush.msra.mxu0 0.0
        %452 = vmatpush.msra.mxu0 0.0
        %453 = vmatpush.msra.mxu0 0.0
        %454 = vmatpush.msra.mxu0 0.0
        %455 = vmatpush.msra.mxu0 0.0
        %456 = vmatpush.msra.mxu0 0.0
        %457 = vmatpush.msra.mxu0 0.0
        %458 = vmatpush.msra.mxu0 0.0
        %459 = vmatpush.msra.mxu0 0.0
        %460 = vmatpush.msra.mxu0 0.0
        %461 = vmatpush.msra.mxu0 0.0
        %462 = vmatpush.msra.mxu0 0.0
        %463 = vmatpush.msra.mxu0 0.0
        %464 = vmatpush.msra.mxu0 0.0
        %465 = vmatpush.msra.mxu0 0.0
        %466 = vmatpush.msra.mxu0 %v449
        %467 = vmatmul.f32.gmra.mxu0 %v446
        %v468 = vpop.f32.mrf.mxu0
        %v469 = vadd.f32 0.0, %v468
        %470 = vdwg.mxu0
        %v471 = vadd.f32 %v442, %v469
        %v472 = vmax.f32 %v471, 0.0
        %v473 = vld [vmem:[%s162] sm:$0xff]
        %v474 = vmax.f32 %v473, %v472
        %475 = vst [vmem:[%s162] sm:$0xff] %v474
        %v476 = vld [vmem:[%s141] sm:$0xf]
        %v477 = vld [vmem:[%s1] sm:$0xff]
        %v478 = vld [vmem:[%s141 + $0x4] sm:$0xf]
        %v479 = vld [vmem:[%s178] sm:$0xff]
        %v481 = vsel %vm180, %v479, 0
        %v484 = vsel %vm184, %v478, 0
        %486 = vmatpush.msra.mxu0 0.0
        %487 = vmatpush.msra.mxu0 0.0
        %488 = vmatpush.msra.mxu0 0.0
        %489 = vmatpush.msra.mxu0 0.0
        %490 = vmatpush.msra.mxu0 0.0
        %491 = vmatpush.msra.mxu0 0.0
        %492 = vmatpush.msra.mxu0 0.0
        %493 = vmatpush.msra.mxu0 0.0
        %494 = vmatpush.msra.mxu0 0.0
        %495 = vmatpush.msra.mxu0 0.0
        %496 = vmatpush.msra.mxu0 0.0
        %497 = vmatpush.msra.mxu0 0.0
        %498 = vmatpush.msra.mxu0 0.0
        %499 = vmatpush.msra.mxu0 0.0
        %500 = vmatpush.msra.mxu0 0.0
        %501 = vmatpush.msra.mxu0 %v484
        %502 = vmatmul.f32.gmra.mxu0 %v481
        %v503 = vpop.f32.mrf.mxu0
        %v504 = vadd.f32 0.0, %v503
        %505 = vdwg.mxu0
        %v507 = vsel %vm180, %v477, 0
        %v510 = vsel %vm184, %v476, 0
        %512 = vmatpush.msra.mxu0 0.0
        %513 = vmatpush.msra.mxu0 0.0
        %514 = vmatpush.msra.mxu0 0.0
        %515 = vmatpush.msra.mxu0 0.0
        %516 = vmatpush.msra.mxu0 0.0
        %517 = vmatpush.msra.mxu0 0.0
        %518 = vmatpush.msra.mxu0 0.0
        %519 = vmatpush.msra.mxu0 0.0
        %520 = vmatpush.msra.mxu0 0.0
        %521 = vmatpush.msra.mxu0 0.0
        %522 = vmatpush.msra.mxu0 0.0
        %523 = vmatpush.msra.mxu0 0.0
        %524 = vmatpush.msra.mxu0 0.0
        %525 = vmatpush.msra.mxu0 0.0
        %526 = vmatpush.msra.mxu0 0.0
        %527 = vmatpush.msra.mxu0 %v510
        %528 = vmatmul.f32.gmra.mxu0 %v507
        %v529 = vpop.f32.mrf.mxu0
        %v530 = vadd.f32 %v504, %v529
        %531 = vdwg.mxu0
        %v532 = vld [vmem:[%s141 + $0x8] sm:$0xf]
        %v533 = vld [vmem:[%s235] sm:$0xff]
        %v535 = vsel %vm180, %v533, 0
        %v538 = vsel %vm184, %v532, 0
        %540 = vmatpush.msra.mxu0 0.0
        %541 = vmatpush.msra.mxu0 0.0
        %542 = vmatpush.msra.mxu0 0.0
        %543 = vmatpush.msra.mxu0 0.0
        %544 = vmatpush.msra.mxu0 0.0
        %545 = vmatpush.msra.mxu0 0.0
        %546 = vmatpush.msra.mxu0 0.0
        %547 = vmatpush.msra.mxu0 0.0
        %548 = vmatpush.msra.mxu0 0.0
        %549 = vmatpush.msra.mxu0 0.0
        %550 = vmatpush.msra.mxu0 0.0
        %551 = vmatpush.msra.mxu0 0.0
        %552 = vmatpush.msra.mxu0 0.0
        %553 = vmatpush.msra.mxu0 0.0
        %554 = vmatpush.msra.mxu0 0.0
        %555 = vmatpush.msra.mxu0 %v538
        %556 = vmatmul.f32.gmra.mxu0 %v535
        %v557 = vpop.f32.mrf.mxu0
        %v558 = vadd.f32 0.0, %v557
        %559 = vdwg.mxu0
        %v560 = vadd.f32 %v530, %v558
        %v561 = vld [vmem:[%s141 + $0xc] sm:$0xf]
        %v562 = vld [vmem:[%s265] sm:$0xff]
        %v564 = vsel %vm180, %v562, 0
        %v567 = vsel %vm184, %v561, 0
        %569 = vmatpush.msra.mxu0 0.0
        %570 = vmatpush.msra.mxu0 0.0
        %571 = vmatpush.msra.mxu0 0.0
        %572 = vmatpush.msra.mxu0 0.0
        %573 = vmatpush.msra.mxu0 0.0
        %574 = vmatpush.msra.mxu0 0.0
        %575 = vmatpush.msra.mxu0 0.0
        %576 = vmatpush.msra.mxu0 0.0
        %577 = vmatpush.msra.mxu0 0.0
        %578 = vmatpush.msra.mxu0 0.0
        %579 = vmatpush.msra.mxu0 0.0
        %580 = vmatpush.msra.mxu0 0.0
        %581 = vmatpush.msra.mxu0 0.0
        %582 = vmatpush.msra.mxu0 0.0
        %583 = vmatpush.msra.mxu0 0.0
        %584 = vmatpush.msra.mxu0 %v567
        %585 = vmatmul.f32.gmra.mxu0 %v564
        %v586 = vpop.f32.mrf.mxu0
        %v587 = vadd.f32 0.0, %v586
        %588 = vdwg.mxu0
        %v589 = vadd.f32 %v560, %v587
        %v590 = vld [vmem:[%s141 + $0x10] sm:$0xf]
        %v591 = vld [vmem:[%s295] sm:$0xff]
        %v593 = vsel %vm180, %v591, 0
        %v596 = vsel %vm184, %v590, 0
        %598 = vmatpush.msra.mxu0 0.0
        %599 = vmatpush.msra.mxu0 0.0
        %600 = vmatpush.msra.mxu0 0.0
        %601 = vmatpush.msra.mxu0 0.0
        %602 = vmatpush.msra.mxu0 0.0
        %603 = vmatpush.msra.mxu0 0.0
        %604 = vmatpush.msra.mxu0 0.0
        %605 = vmatpush.msra.mxu0 0.0
        %606 = vmatpush.msra.mxu0 0.0
        %607 = vmatpush.msra.mxu0 0.0
        %608 = vmatpush.msra.mxu0 0.0
        %609 = vmatpush.msra.mxu0 0.0
        %610 = vmatpush.msra.mxu0 0.0
        %611 = vmatpush.msra.mxu0 0.0
        %612 = vmatpush.msra.mxu0 0.0
        %613 = vmatpush.msra.mxu0 %v596
        %614 = vmatmul.f32.gmra.mxu0 %v593
        %v615 = vpop.f32.mrf.mxu0
        %v616 = vadd.f32 0.0, %v615
        %617 = vdwg.mxu0
        %v618 = vadd.f32 %v589, %v616
        %v619 = vmax.f32 %v618, 0.0
        %v620 = vld [vmem:[%s162] sm:$0xff]
        %v621 = vmax.f32 %v620, %v619
        %622 = vst [vmem:[%s162] sm:$0xff] %v621
        %v623 = vld [vmem:[%s141 + $0x4] sm:$0xf]
        %v624 = vld [vmem:[%s1] sm:$0xff]
        %v625 = vld [vmem:[%s141 + $0x8] sm:$0xf]
        %v626 = vld [vmem:[%s178] sm:$0xff]
        %v628 = vsel %vm180, %v626, 0
        %v631 = vsel %vm184, %v625, 0
        %633 = vmatpush.msra.mxu0 0.0
        %634 = vmatpush.msra.mxu0 0.0
        %635 = vmatpush.msra.mxu0 0.0
        %636 = vmatpush.msra.mxu0 0.0
        %637 = vmatpush.msra.mxu0 0.0
        %638 = vmatpush.msra.mxu0 0.0
        %639 = vmatpush.msra.mxu0 0.0
        %640 = vmatpush.msra.mxu0 0.0
        %641 = vmatpush.msra.mxu0 0.0
        %642 = vmatpush.msra.mxu0 0.0
        %643 = vmatpush.msra.mxu0 0.0
        %644 = vmatpush.msra.mxu0 0.0
        %645 = vmatpush.msra.mxu0 0.0
        %646 = vmatpush.msra.mxu0 0.0
        %647 = vmatpush.msra.mxu0 0.0
        %648 = vmatpush.msra.mxu0 %v631
        %649 = vmatmul.f32.gmra.mxu0 %v628
        %v650 = vpop.f32.mrf.mxu0
        %v651 = vadd.f32 0.0, %v650
        %652 = vdwg.mxu0
        %v654 = vsel %vm180, %v624, 0
        %v657 = vsel %vm184, %v623, 0
        %659 = vmatpush.msra.mxu0 0.0
        %660 = vmatpush.msra.mxu0 0.0
        %661 = vmatpush.msra.mxu0 0.0
        %662 = vmatpush.msra.mxu0 0.0
        %663 = vmatpush.msra.mxu0 0.0
        %664 = vmatpush.msra.mxu0 0.0
        %665 = vmatpush.msra.mxu0 0.0
        %666 = vmatpush.msra.mxu0 0.0
        %667 = vmatpush.msra.mxu0 0.0
        %668 = vmatpush.msra.mxu0 0.0
        %669 = vmatpush.msra.mxu0 0.0
        %670 = vmatpush.msra.mxu0 0.0
        %671 = vmatpush.msra.mxu0 0.0
        %672 = vmatpush.msra.mxu0 0.0
        %673 = vmatpush.msra.mxu0 0.0
        %674 = vmatpush.msra.mxu0 %v657
        %675 = vmatmul.f32.gmra.mxu0 %v654
        %v676 = vpop.f32.mrf.mxu0
        %v677 = vadd.f32 %v651, %v676
        %678 = vdwg.mxu0
        %v679 = vld [vmem:[%s141 + $0xc] sm:$0xf]
        %v680 = vld [vmem:[%s235] sm:$0xff]
        %v682 = vsel %vm180, %v680, 0
        %v685 = vsel %vm184, %v679, 0
        %687 = vmatpush.msra.mxu0 0.0
        %688 = vmatpush.msra.mxu0 0.0
        %689 = vmatpush.msra.mxu0 0.0
        %690 = vmatpush.msra.mxu0 0.0
        %691 = vmatpush.msra.mxu0 0.0
        %692 = vmatpush.msra.mxu0 0.0
        %693 = vmatpush.msra.mxu0 0.0
        %694 = vmatpush.msra.mxu0 0.0
        %695 = vmatpush.msra.mxu0 0.0
        %696 = vmatpush.msra.mxu0 0.0
        %697 = vmatpush.msra.mxu0 0.0
        %698 = vmatpush.msra.mxu0 0.0
        %699 = vmatpush.msra.mxu0 0.0
        %700 = vmatpush.msra.mxu0 0.0
        %701 = vmatpush.msra.mxu0 0.0
        %702 = vmatpush.msra.mxu0 %v685
        %703 = vmatmul.f32.gmra.mxu0 %v682
        %v704 = vpop.f32.mrf.mxu0
        %v705 = vadd.f32 0.0, %v704
        %706 = vdwg.mxu0
        %v707 = vadd.f32 %v677, %v705
        %v708 = vld [vmem:[%s141 + $0x10] sm:$0xf]
        %v709 = vld [vmem:[%s265] sm:$0xff]
        %v711 = vsel %vm180, %v709, 0
        %v714 = vsel %vm184, %v708, 0
        %716 = vmatpush.msra.mxu0 0.0
        %717 = vmatpush.msra.mxu0 0.0
        %718 = vmatpush.msra.mxu0 0.0
        %719 = vmatpush.msra.mxu0 0.0
        %720 = vmatpush.msra.mxu0 0.0
        %721 = vmatpush.msra.mxu0 0.0
        %722 = vmatpush.msra.mxu0 0.0
        %723 = vmatpush.msra.mxu0 0.0
        %724 = vmatpush.msra.mxu0 0.0
        %725 = vmatpush.msra.mxu0 0.0
        %726 = vmatpush.msra.mxu0 0.0
        %727 = vmatpush.msra.mxu0 0.0
        %728 = vmatpush.msra.mxu0 0.0
        %729 = vmatpush.msra.mxu0 0.0
        %730 = vmatpush.msra.mxu0 0.0
        %731 = vmatpush.msra.mxu0 %v714
        %732 = vmatmul.f32.gmra.mxu0 %v711
        %v733 = vpop.f32.mrf.mxu0
        %v734 = vadd.f32 0.0, %v733
        %735 = vdwg.mxu0
        %v736 = vadd.f32 %v707, %v734
        %v737 = vld [vmem:[%s141 + $0x14] sm:$0xf]
        %v738 = vld [vmem:[%s295] sm:$0xff]
        %v740 = vsel %vm180, %v738, 0
        %v743 = vsel %vm184, %v737, 0
        %745 = vmatpush.msra.mxu0 0.0
        %746 = vmatpush.msra.mxu0 0.0
        %747 = vmatpush.msra.mxu0 0.0
        %748 = vmatpush.msra.mxu0 0.0
        %749 = vmatpush.msra.mxu0 0.0
        %750 = vmatpush.msra.mxu0 0.0
        %751 = vmatpush.msra.mxu0 0.0
        %752 = vmatpush.msra.mxu0 0.0
        %753 = vmatpush.msra.mxu0 0.0
        %754 = vmatpush.msra.mxu0 0.0
        %755 = vmatpush.msra.mxu0 0.0
        %756 = vmatpush.msra.mxu0 0.0
        %757 = vmatpush.msra.mxu0 0.0
        %758 = vmatpush.msra.mxu0 0.0
        %759 = vmatpush.msra.mxu0 0.0
        %760 = vmatpush.msra.mxu0 %v743
        %761 = vmatmul.f32.gmra.mxu0 %v740
        %v762 = vpop.f32.mrf.mxu0
        %v763 = vadd.f32 0.0, %v762
        %764 = vdwg.mxu0
        %v765 = vadd.f32 %v736, %v763
        %v766 = vmax.f32 %v765, 0.0
        %v767 = vld [vmem:[%s162] sm:$0xff]
        %v768 = vmax.f32 %v767, %v766
        %769 = vst [vmem:[%s162] sm:$0xff] %v768
        %v770 = vld [vmem:[%s141 + $0x8] sm:$0xf]
        %v771 = vld [vmem:[%s1] sm:$0xff]
        %v772 = vld [vmem:[%s141 + $0xc] sm:$0xf]
        %v773 = vld [vmem:[%s178] sm:$0xff]
        %v775 = vsel %vm180, %v773, 0
        %v778 = vsel %vm184, %v772, 0
        %780 = vmatpush.msra.mxu0 0.0
        %781 = vmatpush.msra.mxu0 0.0
        %782 = vmatpush.msra.mxu0 0.0
        %783 = vmatpush.msra.mxu0 0.0
        %784 = vmatpush.msra.mxu0 0.0
        %785 = vmatpush.msra.mxu0 0.0
        %786 = vmatpush.msra.mxu0 0.0
        %787 = vmatpush.msra.mxu0 0.0
        %788 = vmatpush.msra.mxu0 0.0
        %789 = vmatpush.msra.mxu0 0.0
        %790 = vmatpush.msra.mxu0 0.0
        %791 = vmatpush.msra.mxu0 0.0
        %792 = vmatpush.msra.mxu0 0.0
        %793 = vmatpush.msra.mxu0 0.0
        %794 = vmatpush.msra.mxu0 0.0
        %795 = vmatpush.msra.mxu0 %v778
        %796 = vmatmul.f32.gmra.mxu0 %v775
        %v797 = vpop.f32.mrf.mxu0
        %v798 = vadd.f32 0.0, %v797
        %799 = vdwg.mxu0
        %v801 = vsel %vm180, %v771, 0
        %v804 = vsel %vm184, %v770, 0
        %806 = vmatpush.msra.mxu0 0.0
        %807 = vmatpush.msra.mxu0 0.0
        %808 = vmatpush.msra.mxu0 0.0
        %809 = vmatpush.msra.mxu0 0.0
        %810 = vmatpush.msra.mxu0 0.0
        %811 = vmatpush.msra.mxu0 0.0
        %812 = vmatpush.msra.mxu0 0.0
        %813 = vmatpush.msra.mxu0 0.0
        %814 = vmatpush.msra.mxu0 0.0
        %815 = vmatpush.msra.mxu0 0.0
        %816 = vmatpush.msra.mxu0 0.0
        %817 = vmatpush.msra.mxu0 0.0
        %818 = vmatpush.msra.mxu0 0.0
        %819 = vmatpush.msra.mxu0 0.0
        %820 = vmatpush.msra.mxu0 0.0
        %821 = vmatpush.msra.mxu0 %v804
        %822 = vmatmul.f32.gmra.mxu0 %v801
        %v823 = vpop.f32.mrf.mxu0
        %v824 = vadd.f32 %v798, %v823
        %825 = vdwg.mxu0
        %v826 = vld [vmem:[%s141 + $0x10] sm:$0xf]
        %v827 = vld [vmem:[%s235] sm:$0xff]
        %v829 = vsel %vm180, %v827, 0
        %v832 = vsel %vm184, %v826, 0
        %834 = vmatpush.msra.mxu0 0.0
        %835 = vmatpush.msra.mxu0 0.0
        %836 = vmatpush.msra.mxu0 0.0
        %837 = vmatpush.msra.mxu0 0.0
        %838 = vmatpush.msra.mxu0 0.0
        %839 = vmatpush.msra.mxu0 0.0
        %840 = vmatpush.msra.mxu0 0.0
        %841 = vmatpush.msra.mxu0 0.0
        %842 = vmatpush.msra.mxu0 0.0
        %843 = vmatpush.msra.mxu0 0.0
        %844 = vmatpush.msra.mxu0 0.0
        %845 = vmatpush.msra.mxu0 0.0
        %846 = vmatpush.msra.mxu0 0.0
        %847 = vmatpush.msra.mxu0 0.0
        %848 = vmatpush.msra.mxu0 0.0
        %849 = vmatpush.msra.mxu0 %v832
        %850 = vmatmul.f32.gmra.mxu0 %v829
        %v851 = vpop.f32.mrf.mxu0
        %v852 = vadd.f32 0.0, %v851
        %853 = vdwg.mxu0
        %v854 = vadd.f32 %v824, %v852
        %v855 = vld [vmem:[%s141 + $0x14] sm:$0xf]
        %v856 = vld [vmem:[%s265] sm:$0xff]
        %v858 = vsel %vm180, %v856, 0
        %v861 = vsel %vm184, %v855, 0
        %863 = vmatpush.msra.mxu0 0.0
        %864 = vmatpush.msra.mxu0 0.0
        %865 = vmatpush.msra.mxu0 0.0
        %866 = vmatpush.msra.mxu0 0.0
        %867 = vmatpush.msra.mxu0 0.0
        %868 = vmatpush.msra.mxu0 0.0
        %869 = vmatpush.msra.mxu0 0.0
        %870 = vmatpush.msra.mxu0 0.0
        %871 = vmatpush.msra.mxu0 0.0
        %872 = vmatpush.msra.mxu0 0.0
        %873 = vmatpush.msra.mxu0 0.0
        %874 = vmatpush.msra.mxu0 0.0
        %875 = vmatpush.msra.mxu0 0.0
        %876 = vmatpush.msra.mxu0 0.0
        %877 = vmatpush.msra.mxu0 0.0
        %878 = vmatpush.msra.mxu0 %v861
        %879 = vmatmul.f32.gmra.mxu0 %v858
        %v880 = vpop.f32.mrf.mxu0
        %v881 = vadd.f32 0.0, %v880
        %882 = vdwg.mxu0
        %v883 = vadd.f32 %v854, %v881
        %v884 = vld [vmem:[%s141 + $0x18] sm:$0xf]
        %v885 = vld [vmem:[%s295] sm:$0xff]
        %v887 = vsel %vm180, %v885, 0
        %v890 = vsel %vm184, %v884, 0
        %892 = vmatpush.msra.mxu0 0.0
        %893 = vmatpush.msra.mxu0 0.0
        %894 = vmatpush.msra.mxu0 0.0
        %895 = vmatpush.msra.mxu0 0.0
        %896 = vmatpush.msra.mxu0 0.0
        %897 = vmatpush.msra.mxu0 0.0
        %898 = vmatpush.msra.mxu0 0.0
        %899 = vmatpush.msra.mxu0 0.0
        %900 = vmatpush.msra.mxu0 0.0
        %901 = vmatpush.msra.mxu0 0.0
        %902 = vmatpush.msra.mxu0 0.0
        %903 = vmatpush.msra.mxu0 0.0
        %904 = vmatpush.msra.mxu0 0.0
        %905 = vmatpush.msra.mxu0 0.0
        %906 = vmatpush.msra.mxu0 0.0
        %907 = vmatpush.msra.mxu0 %v890
        %908 = vmatmul.f32.gmra.mxu0 %v887
        %v909 = vpop.f32.mrf.mxu0
        %v910 = vadd.f32 0.0, %v909
        %911 = vdwg.mxu0
        %v912 = vadd.f32 %v883, %v910
        %v913 = vmax.f32 %v912, 0.0
        %v914 = vld [vmem:[%s162] sm:$0xff]
        %v915 = vmax.f32 %v914, %v913
        %916 = vst [vmem:[%s162] sm:$0xff] %v915
        %v917 = vld [vmem:[%s141 + $0xc] sm:$0xf]
        %v918 = vld [vmem:[%s1] sm:$0xff]
        %v919 = vld [vmem:[%s141 + $0x10] sm:$0xf]
        %v920 = vld [vmem:[%s178] sm:$0xff]
        %v922 = vsel %vm180, %v920, 0
        %v925 = vsel %vm184, %v919, 0
        %927 = vmatpush.msra.mxu0 0.0
        %928 = vmatpush.msra.mxu0 0.0
        %929 = vmatpush.msra.mxu0 0.0
        %930 = vmatpush.msra.mxu0 0.0
        %931 = vmatpush.msra.mxu0 0.0
        %932 = vmatpush.msra.mxu0 0.0
        %933 = vmatpush.msra.mxu0 0.0
        %934 = vmatpush.msra.mxu0 0.0
        %935 = vmatpush.msra.mxu0 0.0
        %936 = vmatpush.msra.mxu0 0.0
        %937 = vmatpush.msra.mxu0 0.0
        %938 = vmatpush.msra.mxu0 0.0
        %939 = vmatpush.msra.mxu0 0.0
        %940 = vmatpush.msra.mxu0 0.0
        %941 = vmatpush.msra.mxu0 0.0
        %942 = vmatpush.msra.mxu0 %v925
        %943 = vmatmul.f32.gmra.mxu0 %v922
        %v944 = vpop.f32.mrf.mxu0
        %v945 = vadd.f32 0.0, %v944
        %946 = vdwg.mxu0
        %v948 = vsel %vm180, %v918, 0
        %v951 = vsel %vm184, %v917, 0
        %953 = vmatpush.msra.mxu0 0.0
        %954 = vmatpush.msra.mxu0 0.0
        %955 = vmatpush.msra.mxu0 0.0
        %956 = vmatpush.msra.mxu0 0.0
        %957 = vmatpush.msra.mxu0 0.0
        %958 = vmatpush.msra.mxu0 0.0
        %959 = vmatpush.msra.mxu0 0.0
        %960 = vmatpush.msra.mxu0 0.0
        %961 = vmatpush.msra.mxu0 0.0
        %962 = vmatpush.msra.mxu0 0.0
        %963 = vmatpush.msra.mxu0 0.0
        %964 = vmatpush.msra.mxu0 0.0
        %965 = vmatpush.msra.mxu0 0.0
        %966 = vmatpush.msra.mxu0 0.0
        %967 = vmatpush.msra.mxu0 0.0
        %968 = vmatpush.msra.mxu0 %v951
        %969 = vmatmul.f32.gmra.mxu0 %v948
        %v970 = vpop.f32.mrf.mxu0
        %v971 = vadd.f32 %v945, %v970
        %972 = vdwg.mxu0
        %v973 = vld [vmem:[%s141 + $0x14] sm:$0xf]
        %v974 = vld [vmem:[%s235] sm:$0xff]
        %v976 = vsel %vm180, %v974, 0
        %v979 = vsel %vm184, %v973, 0
        %981 = vmatpush.msra.mxu0 0.0
        %982 = vmatpush.msra.mxu0 0.0
        %983 = vmatpush.msra.mxu0 0.0
        %984 = vmatpush.msra.mxu0 0.0
        %985 = vmatpush.msra.mxu0 0.0
        %986 = vmatpush.msra.mxu0 0.0
        %987 = vmatpush.msra.mxu0 0.0
        %988 = vmatpush.msra.mxu0 0.0
        %989 = vmatpush.msra.mxu0 0.0
        %990 = vmatpush.msra.mxu0 0.0
        %991 = vmatpush.msra.mxu0 0.0
        %992 = vmatpush.msra.mxu0 0.0
        %993 = vmatpush.msra.mxu0 0.0
        %994 = vmatpush.msra.mxu0 0.0
        %995 = vmatpush.msra.mxu0 0.0
        %996 = vmatpush.msra.mxu0 %v979
        %997 = vmatmul.f32.gmra.mxu0 %v976
        %v998 = vpop.f32.mrf.mxu0
        %v999 = vadd.f32 0.0, %v998
        %1000 = vdwg.mxu0
        %v1001 = vadd.f32 %v971, %v999
        %v1002 = vld [vmem:[%s141 + $0x18] sm:$0xf]
        %v1003 = vld [vmem:[%s265] sm:$0xff]
        %v1005 = vsel %vm180, %v1003, 0
        %v1008 = vsel %vm184, %v1002, 0
        %1010 = vmatpush.msra.mxu0 0.0
        %1011 = vmatpush.msra.mxu0 0.0
        %1012 = vmatpush.msra.mxu0 0.0
        %1013 = vmatpush.msra.mxu0 0.0
        %1014 = vmatpush.msra.mxu0 0.0
        %1015 = vmatpush.msra.mxu0 0.0
        %1016 = vmatpush.msra.mxu0 0.0
        %1017 = vmatpush.msra.mxu0 0.0
        %1018 = vmatpush.msra.mxu0 0.0
        %1019 = vmatpush.msra.mxu0 0.0
        %1020 = vmatpush.msra.mxu0 0.0
        %1021 = vmatpush.msra.mxu0 0.0
        %1022 = vmatpush.msra.mxu0 0.0
        %1023 = vmatpush.msra.mxu0 0.0
        %1024 = vmatpush.msra.mxu0 0.0
        %1025 = vmatpush.msra.mxu0 %v1008
        %1026 = vmatmul.f32.gmra.mxu0 %v1005
        %v1027 = vpop.f32.mrf.mxu0
        %v1028 = vadd.f32 0.0, %v1027
        %1029 = vdwg.mxu0
        %v1030 = vadd.f32 %v1001, %v1028
        %v1031 = vld [vmem:[%s141 + $0x1c] sm:$0xf]
        %v1032 = vld [vmem:[%s295] sm:$0xff]
        %v1034 = vsel %vm180, %v1032, 0
        %v1037 = vsel %vm184, %v1031, 0
        %1039 = vmatpush.msra.mxu0 0.0
        %1040 = vmatpush.msra.mxu0 0.0
        %1041 = vmatpush.msra.mxu0 0.0
        %1042 = vmatpush.msra.mxu0 0.0
        %1043 = vmatpush.msra.mxu0 0.0
        %1044 = vmatpush.msra.mxu0 0.0
        %1045 = vmatpush.msra.mxu0 0.0
        %1046 = vmatpush.msra.mxu0 0.0
        %1047 = vmatpush.msra.mxu0 0.0
        %1048 = vmatpush.msra.mxu0 0.0
        %1049 = vmatpush.msra.mxu0 0.0
        %1050 = vmatpush.msra.mxu0 0.0
        %1051 = vmatpush.msra.mxu0 0.0
        %1052 = vmatpush.msra.mxu0 0.0
        %1053 = vmatpush.msra.mxu0 0.0
        %1054 = vmatpush.msra.mxu0 %v1037
        %1055 = vmatmul.f32.gmra.mxu0 %v1034
        %v1056 = vpop.f32.mrf.mxu0
        %v1057 = vadd.f32 0.0, %v1056
        %1058 = vdwg.mxu0
        %v1059 = vadd.f32 %v1030, %v1057
        %v1060 = vmax.f32 %v1059, 0.0
        %v1061 = vld [vmem:[%s162] sm:$0xff]
        %v1062 = vmax.f32 %v1061, %v1060
        %1063 = vst [vmem:[%s162] sm:$0xff] %v1062
        %v1064 = vld [vmem:[%s141 + $0x10] sm:$0xf]
        %v1065 = vld [vmem:[%s1] sm:$0xff]
        %v1066 = vld [vmem:[%s141 + $0x14] sm:$0xf]
        %v1067 = vld [vmem:[%s178] sm:$0xff]
        %v1069 = vsel %vm180, %v1067, 0
        %v1072 = vsel %vm184, %v1066, 0
        %1074 = vmatpush.msra.mxu0 0.0
        %1075 = vmatpush.msra.mxu0 0.0
        %1076 = vmatpush.msra.mxu0 0.0
        %1077 = vmatpush.msra.mxu0 0.0
        %1078 = vmatpush.msra.mxu0 0.0
        %1079 = vmatpush.msra.mxu0 0.0
        %1080 = vmatpush.msra.mxu0 0.0
        %1081 = vmatpush.msra.mxu0 0.0
        %1082 = vmatpush.msra.mxu0 0.0
        %1083 = vmatpush.msra.mxu0 0.0
        %1084 = vmatpush.msra.mxu0 0.0
        %1085 = vmatpush.msra.mxu0 0.0
        %1086 = vmatpush.msra.mxu0 0.0
        %1087 = vmatpush.msra.mxu0 0.0
        %1088 = vmatpush.msra.mxu0 0.0
        %1089 = vmatpush.msra.mxu0 %v1072
        %1090 = vmatmul.f32.gmra.mxu0 %v1069
        %v1091 = vpop.f32.mrf.mxu0
        %v1092 = vadd.f32 0.0, %v1091
        %1093 = vdwg.mxu0
        %v1095 = vsel %vm180, %v1065, 0
        %v1098 = vsel %vm184, %v1064, 0
        %1100 = vmatpush.msra.mxu0 0.0
        %1101 = vmatpush.msra.mxu0 0.0
        %1102 = vmatpush.msra.mxu0 0.0
        %1103 = vmatpush.msra.mxu0 0.0
        %1104 = vmatpush.msra.mxu0 0.0
        %1105 = vmatpush.msra.mxu0 0.0
        %1106 = vmatpush.msra.mxu0 0.0
        %1107 = vmatpush.msra.mxu0 0.0
        %1108 = vmatpush.msra.mxu0 0.0
        %1109 = vmatpush.msra.mxu0 0.0
        %1110 = vmatpush.msra.mxu0 0.0
        %1111 = vmatpush.msra.mxu0 0.0
        %1112 = vmatpush.msra.mxu0 0.0
        %1113 = vmatpush.msra.mxu0 0.0
        %1114 = vmatpush.msra.mxu0 0.0
        %1115 = vmatpush.msra.mxu0 %v1098
        %1116 = vmatmul.f32.gmra.mxu0 %v1095
        %v1117 = vpop.f32.mrf.mxu0
        %v1118 = vadd.f32 %v1092, %v1117
        %1119 = vdwg.mxu0
        %v1120 = vld [vmem:[%s141 + $0x18] sm:$0xf]
        %v1121 = vld [vmem:[%s235] sm:$0xff]
        %v1123 = vsel %vm180, %v1121, 0
        %v1126 = vsel %vm184, %v1120, 0
        %1128 = vmatpush.msra.mxu0 0.0
        %1129 = vmatpush.msra.mxu0 0.0
        %1130 = vmatpush.msra.mxu0 0.0
        %1131 = vmatpush.msra.mxu0 0.0
        %1132 = vmatpush.msra.mxu0 0.0
        %1133 = vmatpush.msra.mxu0 0.0
        %1134 = vmatpush.msra.mxu0 0.0
        %1135 = vmatpush.msra.mxu0 0.0
        %1136 = vmatpush.msra.mxu0 0.0
        %1137 = vmatpush.msra.mxu0 0.0
        %1138 = vmatpush.msra.mxu0 0.0
        %1139 = vmatpush.msra.mxu0 0.0
        %1140 = vmatpush.msra.mxu0 0.0
        %1141 = vmatpush.msra.mxu0 0.0
        %1142 = vmatpush.msra.mxu0 0.0
        %1143 = vmatpush.msra.mxu0 %v1126
        %1144 = vmatmul.f32.gmra.mxu0 %v1123
        %v1145 = vpop.f32.mrf.mxu0
        %v1146 = vadd.f32 0.0, %v1145
        %1147 = vdwg.mxu0
        %v1148 = vadd.f32 %v1118, %v1146
        %v1149 = vld [vmem:[%s141 + $0x1c] sm:$0xf]
        %v1150 = vld [vmem:[%s265] sm:$0xff]
        %v1152 = vsel %vm180, %v1150, 0
        %v1155 = vsel %vm184, %v1149, 0
        %1157 = vmatpush.msra.mxu0 0.0
        %1158 = vmatpush.msra.mxu0 0.0
        %1159 = vmatpush.msra.mxu0 0.0
        %1160 = vmatpush.msra.mxu0 0.0
        %1161 = vmatpush.msra.mxu0 0.0
        %1162 = vmatpush.msra.mxu0 0.0
        %1163 = vmatpush.msra.mxu0 0.0
        %1164 = vmatpush.msra.mxu0 0.0
        %1165 = vmatpush.msra.mxu0 0.0
        %1166 = vmatpush.msra.mxu0 0.0
        %1167 = vmatpush.msra.mxu0 0.0
        %1168 = vmatpush.msra.mxu0 0.0
        %1169 = vmatpush.msra.mxu0 0.0
        %1170 = vmatpush.msra.mxu0 0.0
        %1171 = vmatpush.msra.mxu0 0.0
        %1172 = vmatpush.msra.mxu0 %v1155
        %1173 = vmatmul.f32.gmra.mxu0 %v1152
        %v1174 = vpop.f32.mrf.mxu0
        %v1175 = vadd.f32 0.0, %v1174
        %1176 = vdwg.mxu0
        %v1177 = vadd.f32 %v1148, %v1175
        %v1178 = vld [vmem:[%s141 + $0x20] sm:$0xf]
        %v1179 = vld [vmem:[%s295] sm:$0xff]
        %v1181 = vsel %vm180, %v1179, 0
        %v1184 = vsel %vm184, %v1178, 0
        %1186 = vmatpush.msra.mxu0 0.0
        %1187 = vmatpush.msra.mxu0 0.0
        %1188 = vmatpush.msra.mxu0 0.0
        %1189 = vmatpush.msra.mxu0 0.0
        %1190 = vmatpush.msra.mxu0 0.0
        %1191 = vmatpush.msra.mxu0 0.0
        %1192 = vmatpush.msra.mxu0 0.0
        %1193 = vmatpush.msra.mxu0 0.0
        %1194 = vmatpush.msra.mxu0 0.0
        %1195 = vmatpush.msra.mxu0 0.0
        %1196 = vmatpush.msra.mxu0 0.0
        %1197 = vmatpush.msra.mxu0 0.0
        %1198 = vmatpush.msra.mxu0 0.0
        %1199 = vmatpush.msra.mxu0 0.0
        %1200 = vmatpush.msra.mxu0 0.0
        %1201 = vmatpush.msra.mxu0 %v1184
        %1202 = vmatmul.f32.gmra.mxu0 %v1181
        %v1203 = vpop.f32.mrf.mxu0
        %v1204 = vadd.f32 0.0, %v1203
        %1205 = vdwg.mxu0
        %v1206 = vadd.f32 %v1177, %v1204
        %v1207 = vmax.f32 %v1206, 0.0
        %v1208 = vld [vmem:[%s162] sm:$0xff]
        %v1209 = vmax.f32 %v1208, %v1207
        %1210 = vst [vmem:[%s162] sm:$0xff] %v1209
        %v1211 = vld [vmem:[%s141 + $0x14] sm:$0xf]
        %v1212 = vld [vmem:[%s1] sm:$0xff]
        %v1213 = vld [vmem:[%s141 + $0x18] sm:$0xf]
        %v1214 = vld [vmem:[%s178] sm:$0xff]
        %v1216 = vsel %vm180, %v1214, 0
        %v1219 = vsel %vm184, %v1213, 0
        %1221 = vmatpush.msra.mxu0 0.0
        %1222 = vmatpush.msra.mxu0 0.0
        %1223 = vmatpush.msra.mxu0 0.0
        %1224 = vmatpush.msra.mxu0 0.0
        %1225 = vmatpush.msra.mxu0 0.0
        %1226 = vmatpush.msra.mxu0 0.0
        %1227 = vmatpush.msra.mxu0 0.0
        %1228 = vmatpush.msra.mxu0 0.0
        %1229 = vmatpush.msra.mxu0 0.0
        %1230 = vmatpush.msra.mxu0 0.0
        %1231 = vmatpush.msra.mxu0 0.0
        %1232 = vmatpush.msra.mxu0 0.0
        %1233 = vmatpush.msra.mxu0 0.0
        %1234 = vmatpush.msra.mxu0 0.0
        %1235 = vmatpush.msra.mxu0 0.0
        %1236 = vmatpush.msra.mxu0 %v1219
        %1237 = vmatmul.f32.gmra.mxu0 %v1216
        %v1238 = vpop.f32.mrf.mxu0
        %v1239 = vadd.f32 0.0, %v1238
        %1240 = vdwg.mxu0
        %v1242 = vsel %vm180, %v1212, 0
        %v1245 = vsel %vm184, %v1211, 0
        %1247 = vmatpush.msra.mxu0 0.0
        %1248 = vmatpush.msra.mxu0 0.0
        %1249 = vmatpush.msra.mxu0 0.0
        %1250 = vmatpush.msra.mxu0 0.0
        %1251 = vmatpush.msra.mxu0 0.0
        %1252 = vmatpush.msra.mxu0 0.0
        %1253 = vmatpush.msra.mxu0 0.0
        %1254 = vmatpush.msra.mxu0 0.0
        %1255 = vmatpush.msra.mxu0 0.0
        %1256 = vmatpush.msra.mxu0 0.0
        %1257 = vmatpush.msra.mxu0 0.0
        %1258 = vmatpush.msra.mxu0 0.0
        %1259 = vmatpush.msra.mxu0 0.0
        %1260 = vmatpush.msra.mxu0 0.0
        %1261 = vmatpush.msra.mxu0 0.0
        %1262 = vmatpush.msra.mxu0 %v1245
        %1263 = vmatmul.f32.gmra.mxu0 %v1242
        %v1264 = vpop.f32.mrf.mxu0
        %v1265 = vadd.f32 %v1239, %v1264
        %1266 = vdwg.mxu0
        %v1267 = vld [vmem:[%s141 + $0x1c] sm:$0xf]
        %v1268 = vld [vmem:[%s235] sm:$0xff]
        %v1270 = vsel %vm180, %v1268, 0
        %v1273 = vsel %vm184, %v1267, 0
        %1275 = vmatpush.msra.mxu0 0.0
        %1276 = vmatpush.msra.mxu0 0.0
        %1277 = vmatpush.msra.mxu0 0.0
        %1278 = vmatpush.msra.mxu0 0.0
        %1279 = vmatpush.msra.mxu0 0.0
        %1280 = vmatpush.msra.mxu0 0.0
        %1281 = vmatpush.msra.mxu0 0.0
        %1282 = vmatpush.msra.mxu0 0.0
        %1283 = vmatpush.msra.mxu0 0.0
        %1284 = vmatpush.msra.mxu0 0.0
        %1285 = vmatpush.msra.mxu0 0.0
        %1286 = vmatpush.msra.mxu0 0.0
        %1287 = vmatpush.msra.mxu0 0.0
        %1288 = vmatpush.msra.mxu0 0.0
        %1289 = vmatpush.msra.mxu0 0.0
        %1290 = vmatpush.msra.mxu0 %v1273
        %1291 = vmatmul.f32.gmra.mxu0 %v1270
        %v1292 = vpop.f32.mrf.mxu0
        %v1293 = vadd.f32 0.0, %v1292
        %1294 = vdwg.mxu0
        %v1295 = vadd.f32 %v1265, %v1293
        %v1296 = vld [vmem:[%s141 + $0x20] sm:$0xf]
        %v1297 = vld [vmem:[%s265] sm:$0xff]
        %v1299 = vsel %vm180, %v1297, 0
        %v1302 = vsel %vm184, %v1296, 0
        %1304 = vmatpush.msra.mxu0 0.0
        %1305 = vmatpush.msra.mxu0 0.0
        %1306 = vmatpush.msra.mxu0 0.0
        %1307 = vmatpush.msra.mxu0 0.0
        %1308 = vmatpush.msra.mxu0 0.0
        %1309 = vmatpush.msra.mxu0 0.0
        %1310 = vmatpush.msra.mxu0 0.0
        %1311 = vmatpush.msra.mxu0 0.0
        %1312 = vmatpush.msra.mxu0 0.0
        %1313 = vmatpush.msra.mxu0 0.0
        %1314 = vmatpush.msra.mxu0 0.0
        %1315 = vmatpush.msra.mxu0 0.0
        %1316 = vmatpush.msra.mxu0 0.0
        %1317 = vmatpush.msra.mxu0 0.0
        %1318 = vmatpush.msra.mxu0 0.0
        %1319 = vmatpush.msra.mxu0 %v1302
        %1320 = vmatmul.f32.gmra.mxu0 %v1299
        %v1321 = vpop.f32.mrf.mxu0
        %v1322 = vadd.f32 0.0, %v1321
        %1323 = vdwg.mxu0
        %v1324 = vadd.f32 %v1295, %v1322
        %v1325 = vld [vmem:[%s141 + $0x24] sm:$0xf]
        %v1326 = vld [vmem:[%s295] sm:$0xff]
        %v1328 = vsel %vm180, %v1326, 0
        %v1331 = vsel %vm184, %v1325, 0
        %1333 = vmatpush.msra.mxu0 0.0
        %1334 = vmatpush.msra.mxu0 0.0
        %1335 = vmatpush.msra.mxu0 0.0
        %1336 = vmatpush.msra.mxu0 0.0
        %1337 = vmatpush.msra.mxu0 0.0
        %1338 = vmatpush.msra.mxu0 0.0
        %1339 = vmatpush.msra.mxu0 0.0
        %1340 = vmatpush.msra.mxu0 0.0
        %1341 = vmatpush.msra.mxu0 0.0
        %1342 = vmatpush.msra.mxu0 0.0
        %1343 = vmatpush.msra.mxu0 0.0
        %1344 = vmatpush.msra.mxu0 0.0
        %1345 = vmatpush.msra.mxu0 0.0
        %1346 = vmatpush.msra.mxu0 0.0
        %1347 = vmatpush.msra.mxu0 0.0
        %1348 = vmatpush.msra.mxu0 %v1331
        %1349 = vmatmul.f32.gmra.mxu0 %v1328
        %v1350 = vpop.f32.mrf.mxu0
        %v1351 = vadd.f32 0.0, %v1350
        %1352 = vdwg.mxu0
        %v1353 = vadd.f32 %v1324, %v1351
        %v1354 = vmax.f32 %v1353, 0.0
        %v1355 = vld [vmem:[%s162] sm:$0xff]
        %v1356 = vmax.f32 %v1355, %v1354
        %1357 = vst [vmem:[%s162] sm:$0xff] %v1356
        %v1358 = vld [vmem:[%s141 + $0x18] sm:$0xf]
        %v1359 = vld [vmem:[%s1] sm:$0xff]
        %v1360 = vld [vmem:[%s141 + $0x1c] sm:$0xf]
        %v1361 = vld [vmem:[%s178] sm:$0xff]
        %v1363 = vsel %vm180, %v1361, 0
        %v1366 = vsel %vm184, %v1360, 0
        %1368 = vmatpush.msra.mxu0 0.0
        %1369 = vmatpush.msra.mxu0 0.0
        %1370 = vmatpush.msra.mxu0 0.0
        %1371 = vmatpush.msra.mxu0 0.0
        %1372 = vmatpush.msra.mxu0 0.0
        %1373 = vmatpush.msra.mxu0 0.0
        %1374 = vmatpush.msra.mxu0 0.0
        %1375 = vmatpush.msra.mxu0 0.0
        %1376 = vmatpush.msra.mxu0 0.0
        %1377 = vmatpush.msra.mxu0 0.0
        %1378 = vmatpush.msra.mxu0 0.0
        %1379 = vmatpush.msra.mxu0 0.0
        %1380 = vmatpush.msra.mxu0 0.0
        %1381 = vmatpush.msra.mxu0 0.0
        %1382 = vmatpush.msra.mxu0 0.0
        %1383 = vmatpush.msra.mxu0 %v1366
        %1384 = vmatmul.f32.gmra.mxu0 %v1363
        %v1385 = vpop.f32.mrf.mxu0
        %v1386 = vadd.f32 0.0, %v1385
        %1387 = vdwg.mxu0
        %v1389 = vsel %vm180, %v1359, 0
        %v1392 = vsel %vm184, %v1358, 0
        %1394 = vmatpush.msra.mxu0 0.0
        %1395 = vmatpush.msra.mxu0 0.0
        %1396 = vmatpush.msra.mxu0 0.0
        %1397 = vmatpush.msra.mxu0 0.0
        %1398 = vmatpush.msra.mxu0 0.0
        %1399 = vmatpush.msra.mxu0 0.0
        %1400 = vmatpush.msra.mxu0 0.0
        %1401 = vmatpush.msra.mxu0 0.0
        %1402 = vmatpush.msra.mxu0 0.0
        %1403 = vmatpush.msra.mxu0 0.0
        %1404 = vmatpush.msra.mxu0 0.0
        %1405 = vmatpush.msra.mxu0 0.0
        %1406 = vmatpush.msra.mxu0 0.0
        %1407 = vmatpush.msra.mxu0 0.0
        %1408 = vmatpush.msra.mxu0 0.0
        %1409 = vmatpush.msra.mxu0 %v1392
        %1410 = vmatmul.f32.gmra.mxu0 %v1389
        %v1411 = vpop.f32.mrf.mxu0
        %v1412 = vadd.f32 %v1386, %v1411
        %1413 = vdwg.mxu0
        %v1414 = vld [vmem:[%s141 + $0x20] sm:$0xf]
        %v1415 = vld [vmem:[%s235] sm:$0xff]
        %v1417 = vsel %vm180, %v1415, 0
        %v1420 = vsel %vm184, %v1414, 0
        %1422 = vmatpush.msra.mxu0 0.0
        %1423 = vmatpush.msra.mxu0 0.0
        %1424 = vmatpush.msra.mxu0 0.0
        %1425 = vmatpush.msra.mxu0 0.0
        %1426 = vmatpush.msra.mxu0 0.0
        %1427 = vmatpush.msra.mxu0 0.0
        %1428 = vmatpush.msra.mxu0 0.0
        %1429 = vmatpush.msra.mxu0 0.0
        %1430 = vmatpush.msra.mxu0 0.0
        %1431 = vmatpush.msra.mxu0 0.0
        %1432 = vmatpush.msra.mxu0 0.0
        %1433 = vmatpush.msra.mxu0 0.0
        %1434 = vmatpush.msra.mxu0 0.0
        %1435 = vmatpush.msra.mxu0 0.0
        %1436 = vmatpush.msra.mxu0 0.0
        %1437 = vmatpush.msra.mxu0 %v1420
        %1438 = vmatmul.f32.gmra.mxu0 %v1417
        %v1439 = vpop.f32.mrf.mxu0
        %v1440 = vadd.f32 0.0, %v1439
        %1441 = vdwg.mxu0
        %v1442 = vadd.f32 %v1412, %v1440
        %v1443 = vld [vmem:[%s141 + $0x24] sm:$0xf]
        %v1444 = vld [vmem:[%s265] sm:$0xff]
        %v1446 = vsel %vm180, %v1444, 0
        %v1449 = vsel %vm184, %v1443, 0
        %1451 = vmatpush.msra.mxu0 0.0
        %1452 = vmatpush.msra.mxu0 0.0
        %1453 = vmatpush.msra.mxu0 0.0
        %1454 = vmatpush.msra.mxu0 0.0
        %1455 = vmatpush.msra.mxu0 0.0
        %1456 = vmatpush.msra.mxu0 0.0
        %1457 = vmatpush.msra.mxu0 0.0
        %1458 = vmatpush.msra.mxu0 0.0
        %1459 = vmatpush.msra.mxu0 0.0
        %1460 = vmatpush.msra.mxu0 0.0
        %1461 = vmatpush.msra.mxu0 0.0
        %1462 = vmatpush.msra.mxu0 0.0
        %1463 = vmatpush.msra.mxu0 0.0
        %1464 = vmatpush.msra.mxu0 0.0
        %1465 = vmatpush.msra.mxu0 0.0
        %1466 = vmatpush.msra.mxu0 %v1449
        %1467 = vmatmul.f32.gmra.mxu0 %v1446
        %v1468 = vpop.f32.mrf.mxu0
        %v1469 = vadd.f32 0.0, %v1468
        %1470 = vdwg.mxu0
        %v1471 = vadd.f32 %v1442, %v1469
        %v1472 = vld [vmem:[%s141] sm:$0xf]
        %1473 = vrot.lane.b32.xlu0 %v1472, 120
        %v1474 = vpop.permute.xlu0 %1473
        %v1475 = vsel %vm166, 1, 0
        %vm1476 = vcmp.eq.s32.totalorder %v1475, 1
        %v1477 = vsel %vm1476, %v1474, 0.0
        %v1478 = vld [vmem:[%s295] sm:$0xff]
        %v1480 = vsel %vm180, %v1478, 0
        %v1483 = vsel %vm184, %v1477, 0
        %1485 = vmatpush.msra.mxu0 0.0
        %1486 = vmatpush.msra.mxu0 0.0
        %1487 = vmatpush.msra.mxu0 0.0
        %1488 = vmatpush.msra.mxu0 0.0
        %1489 = vmatpush.msra.mxu0 0.0
        %1490 = vmatpush.msra.mxu0 0.0
        %1491 = vmatpush.msra.mxu0 0.0
        %1492 = vmatpush.msra.mxu0 0.0
        %1493 = vmatpush.msra.mxu0 0.0
        %1494 = vmatpush.msra.mxu0 0.0
        %1495 = vmatpush.msra.mxu0 0.0
        %1496 = vmatpush.msra.mxu0 0.0
        %1497 = vmatpush.msra.mxu0 0.0
        %1498 = vmatpush.msra.mxu0 0.0
        %1499 = vmatpush.msra.mxu0 0.0
        %1500 = vmatpush.msra.mxu0 %v1483
        %1501 = vmatmul.f32.gmra.mxu0 %v1480
        %v1502 = vpop.f32.mrf.mxu0
        %v1503 = vadd.f32 0.0, %v1502
        %1504 = vdwg.mxu0
        %v1505 = vadd.f32 %v1471, %v1503
        %v1506 = vmax.f32 %v1505, 0.0
        %v1507 = vld [vmem:[%s162] sm:$0xff]
        %v1508 = vmax.f32 %v1507, %v1506
        %1509 = vst [vmem:[%s162] sm:$0xff] %v1508
        %v1510 = vld [vmem:[%s141 + $0x1c] sm:$0xf]
        %v1511 = vld [vmem:[%s1] sm:$0xff]
        %v1512 = vld [vmem:[%s141 + $0x20] sm:$0xf]
        %v1513 = vld [vmem:[%s178] sm:$0xff]
        %v1515 = vsel %vm180, %v1513, 0
        %v1518 = vsel %vm184, %v1512, 0
        %1520 = vmatpush.msra.mxu0 0.0
        %1521 = vmatpush.msra.mxu0 0.0
        %1522 = vmatpush.msra.mxu0 0.0
        %1523 = vmatpush.msra.mxu0 0.0
        %1524 = vmatpush.msra.mxu0 0.0
        %1525 = vmatpush.msra.mxu0 0.0
        %1526 = vmatpush.msra.mxu0 0.0
        %1527 = vmatpush.msra.mxu0 0.0
        %1528 = vmatpush.msra.mxu0 0.0
        %1529 = vmatpush.msra.mxu0 0.0
        %1530 = vmatpush.msra.mxu0 0.0
        %1531 = vmatpush.msra.mxu0 0.0
        %1532 = vmatpush.msra.mxu0 0.0
        %1533 = vmatpush.msra.mxu0 0.0
        %1534 = vmatpush.msra.mxu0 0.0
        %1535 = vmatpush.msra.mxu0 %v1518
        %1536 = vmatmul.f32.gmra.mxu0 %v1515
        %v1537 = vpop.f32.mrf.mxu0
        %v1538 = vadd.f32 0.0, %v1537
        %1539 = vdwg.mxu0
        %v1541 = vsel %vm180, %v1511, 0
        %v1544 = vsel %vm184, %v1510, 0
        %1546 = vmatpush.msra.mxu0 0.0
        %1547 = vmatpush.msra.mxu0 0.0
        %1548 = vmatpush.msra.mxu0 0.0
        %1549 = vmatpush.msra.mxu0 0.0
        %1550 = vmatpush.msra.mxu0 0.0
        %1551 = vmatpush.msra.mxu0 0.0
        %1552 = vmatpush.msra.mxu0 0.0
        %1553 = vmatpush.msra.mxu0 0.0
        %1554 = vmatpush.msra.mxu0 0.0
        %1555 = vmatpush.msra.mxu0 0.0
        %1556 = vmatpush.msra.mxu0 0.0
        %1557 = vmatpush.msra.mxu0 0.0
        %1558 = vmatpush.msra.mxu0 0.0
        %1559 = vmatpush.msra.mxu0 0.0
        %1560 = vmatpush.msra.mxu0 0.0
        %1561 = vmatpush.msra.mxu0 %v1544
        %1562 = vmatmul.f32.gmra.mxu0 %v1541
        %v1563 = vpop.f32.mrf.mxu0
        %v1564 = vadd.f32 %v1538, %v1563
        %1565 = vdwg.mxu0
        %v1566 = vld [vmem:[%s141 + $0x24] sm:$0xf]
        %v1567 = vld [vmem:[%s235] sm:$0xff]
        %v1569 = vsel %vm180, %v1567, 0
        %v1572 = vsel %vm184, %v1566, 0
        %1574 = vmatpush.msra.mxu0 0.0
        %1575 = vmatpush.msra.mxu0 0.0
        %1576 = vmatpush.msra.mxu0 0.0
        %1577 = vmatpush.msra.mxu0 0.0
        %1578 = vmatpush.msra.mxu0 0.0
        %1579 = vmatpush.msra.mxu0 0.0
        %1580 = vmatpush.msra.mxu0 0.0
        %1581 = vmatpush.msra.mxu0 0.0
        %1582 = vmatpush.msra.mxu0 0.0
        %1583 = vmatpush.msra.mxu0 0.0
        %1584 = vmatpush.msra.mxu0 0.0
        %1585 = vmatpush.msra.mxu0 0.0
        %1586 = vmatpush.msra.mxu0 0.0
        %1587 = vmatpush.msra.mxu0 0.0
        %1588 = vmatpush.msra.mxu0 0.0
        %1589 = vmatpush.msra.mxu0 %v1572
        %1590 = vmatmul.f32.gmra.mxu0 %v1569
        %v1591 = vpop.f32.mrf.mxu0
        %v1592 = vadd.f32 0.0, %v1591
        %1593 = vdwg.mxu0
        %v1594 = vadd.f32 %v1564, %v1592
        %v1595 = vld [vmem:[%s141] sm:$0xf]
        %1596 = vrot.lane.b32.xlu0 %v1595, 120
        %v1597 = vpop.permute.xlu0 %1596
        %v1598 = vsel %vm1476, %v1597, 0.0
        %v1599 = vld [vmem:[%s265] sm:$0xff]
        %v1601 = vsel %vm180, %v1599, 0
        %v1604 = vsel %vm184, %v1598, 0
        %1606 = vmatpush.msra.mxu0 0.0
        %1607 = vmatpush.msra.mxu0 0.0
        %1608 = vmatpush.msra.mxu0 0.0
        %1609 = vmatpush.msra.mxu0 0.0
        %1610 = vmatpush.msra.mxu0 0.0
        %1611 = vmatpush.msra.mxu0 0.0
        %1612 = vmatpush.msra.mxu0 0.0
        %1613 = vmatpush.msra.mxu0 0.0
        %1614 = vmatpush.msra.mxu0 0.0
        %1615 = vmatpush.msra.mxu0 0.0
        %1616 = vmatpush.msra.mxu0 0.0
        %1617 = vmatpush.msra.mxu0 0.0
        %1618 = vmatpush.msra.mxu0 0.0
        %1619 = vmatpush.msra.mxu0 0.0
        %1620 = vmatpush.msra.mxu0 0.0
        %1621 = vmatpush.msra.mxu0 %v1604
        %1622 = vmatmul.f32.gmra.mxu0 %v1601
        %v1623 = vpop.f32.mrf.mxu0
        %v1624 = vadd.f32 0.0, %v1623
        %1625 = vdwg.mxu0
        %v1626 = vadd.f32 %v1594, %v1624
        %v1627 = vld [vmem:[%s141 + $0x4] sm:$0xf]
        %1628 = vrot.lane.b32.xlu0 %v1627, 120
        %v1629 = vpop.permute.xlu0 %1628
        %v1630 = vsel %vm1476, %v1629, 0.0
        %v1631 = vld [vmem:[%s295] sm:$0xff]
        %v1633 = vsel %vm180, %v1631, 0
        %v1636 = vsel %vm184, %v1630, 0
        %1638 = vmatpush.msra.mxu0 0.0
        %1639 = vmatpush.msra.mxu0 0.0
        %1640 = vmatpush.msra.mxu0 0.0
        %1641 = vmatpush.msra.mxu0 0.0
        %1642 = vmatpush.msra.mxu0 0.0
        %1643 = vmatpush.msra.mxu0 0.0
        %1644 = vmatpush.msra.mxu0 0.0
        %1645 = vmatpush.msra.mxu0 0.0
        %1646 = vmatpush.msra.mxu0 0.0
        %1647 = vmatpush.msra.mxu0 0.0
        %1648 = vmatpush.msra.mxu0 0.0
        %1649 = vmatpush.msra.mxu0 0.0
        %1650 = vmatpush.msra.mxu0 0.0
        %1651 = vmatpush.msra.mxu0 0.0
        %1652 = vmatpush.msra.mxu0 0.0
        %1653 = vmatpush.msra.mxu0 %v1636
        %1654 = vmatmul.f32.gmra.mxu0 %v1633
        %v1655 = vpop.f32.mrf.mxu0
        %v1656 = vadd.f32 0.0, %v1655
        %1657 = vdwg.mxu0
        %v1658 = vadd.f32 %v1626, %v1656
        %v1659 = vmax.f32 %v1658, 0.0
        %v1660 = vld [vmem:[%s162] sm:$0xff]
        %v1661 = vmax.f32 %v1660, %v1659
        %1662 = vst [vmem:[%s162] sm:$0xff] %v1661
        %s1663 = sand.u32 %s74, 1
        %s1664 = scalar_lea.sflag [#allocation4], %s1663
        %s1665 = sand.u32 %s74, 1
        %s1666 = smul.addr %s1665, 8
        %s1667 = scalar_lea.vmem [#allocation5], %s1666
        // Predicated region
        $region33: #{tpu_custom_call.1} parent=27 // pred_check
          %p1668 = pneg %p84
        $region34: #{tpu_custom_call.1} parent=27 // pred_check_branch
          %1670 = sbr.rel (%p1668) target = $region36
        $region35: #{tpu_custom_call.1} parent=27 // pred_region
          %1672 = vsyncadd %s1664, 0
          %s1673 = smul.addr %s19, 8
          %s1674 = scalar_lea.hbm %s2, %s1673
          %s1676 = sshll.u32 %s1667, 4
          %s1677 = int_to_ptr.vmem [resolvable:$true] %s1676
          %s1678 = sshll.u32 %s1674, 4
          %s1679 = int_to_ptr.hbm [resolvable:$true] %s1678
          %1681 = dma.vmem_to_hbm [thread:$0]  %s1677, 128, %s1679, %s1664
        $region36: #{tpu_custom_call.1} parent=27 // pred_fallthru
          _
      $region28: #{tpu_custom_call.1} parent=5 // pred_fallthru
        _
      %p1682 = scmp.le.s32.totalorder 2, %s14
      // Predicated region
      $region37: #{tpu_custom_call.1} parent=5 // pred_check
        %p1683 = pneg %p1682
      $region38: #{tpu_custom_call.1} parent=5 // pred_check_branch
        %1685 = sbr.rel (%p1683) target = $region40
      $region39: #{tpu_custom_call.1} parent=5 // pred_region
        %s1686 = ssub.s32 %s14, 2
        // Predicated region
        $region41: #{tpu_custom_call.1} parent=39 // pred_check
          %p1687 = pneg %p90
        $region42: #{tpu_custom_call.1} parent=39 // pred_check_branch
          %1689 = sbr.rel (%p1687) target = $region44
        $region43: #{tpu_custom_call.1} parent=39 // pred_region
          %s1690 = sand.u32 %s75, 1
          %s1691 = scalar_lea.sflag [#allocation4], %s1690
          %s1692 = sand.u32 %s75, 1
          %s1693 = smul.addr %s1692, 8
          %s1694 = scalar_lea.vmem [#allocation5], %s1693
          %1696 = dma.done %s1691, 128
        $region44: #{tpu_custom_call.1} parent=39 // pred_fallthru
          _
      $region40: #{tpu_custom_call.1} parent=5 // pred_fallthru
        _
    $region6: #{tpu_custom_call.1} parent=1 // loop_footer
      %s18 = sadd.s32 1, %s14
    $region7: #{tpu_custom_call.1} parent=1 // loop_footer_branch
      %13 = sbr.rel target = $region3
    $region8: #{tpu_custom_call.1} parent=1 // loop_exit
      _
    %1697 = vsyncpa [#allocation3], 1
    %s1698 = scalar_lea.sflag [#allocation3], 1
    %1699 = vsyncpa %s1698, 1
    %1700 = vsyncpa [#allocation4], 1
    %s1701 = scalar_lea.sflag [#allocation4], 1
    %1702 = vsyncpa %s1701, 1

</llo_original>
